<compile_context>
chip_gen: v7x
topology: tpu7x:2x2x1
jax: 0.10.0
libtpu: 0.0.40
codegen_flags: <defaults>
</compile_context>

<pallas_src>
from functools import partial

import jax
import jax.numpy as jnp
from jax.experimental import pallas as pl
from jax.experimental.pallas import tpu as pltpu


# ------------------------------ model dims ----------------------------------

C_IN = 3
C_STEM = 16
C_EXP = 48               # expanded channels, split 24 (3x3 dw) + 24 (5x5 dw)
C3 = C_EXP // 2
C5 = C_EXP - C3
C_HEAD = 64
IN_FEATURES = C_HEAD     # backbone.classifier.in_features (reduced, synthetic)
CLS = 128                # classifier width (Linear(in_features, 128))
N_OUT = 2                # output head (Linear(128, 2))
LANE = 128               # lane-pad every channel dim to this
K_STEM = 32              # im2col K: 3*3*C_IN = 27 padded up for sublane alignment


def _round_up(x, m):
    return (x + m - 1) // m * m


def _vmem_limit(est_bytes):
    """Chip-aware VMEM cap: min(75% of physical, max(16 MiB, 2x actual estimate))."""
    cap = 64 * 2**20
    try:
        cap = int(getattr(pltpu.get_tpu_info(), "vmem_capacity_bytes", cap)) or cap
    except Exception:
        pass
    return int(min(cap * 3 // 4, max(16 * 2**20, 2 * int(est_bytes))))


def _pick_group(n):
    """Images per grid step: biggest divisor <= 8 that still leaves >= 2 grid steps
    so both v7x TensorCores get work."""
    for g in (8, 4, 2):
        if n % g == 0 and n // g >= 2:
            return g
    return 1


# ----------------------------- Pallas kernels --------------------------------

def _fused_backbone_kernel(cols_ref, sw_ref, W_ref, B_ref, dw_ref, pool_ref,
                           halo, d_buf, *, G, Ho, Wo):
    """G images per grid step, everything in VMEM:
       stem (im2col matmul) + ReLU -> expand 1x1 + SiLU -> merged mixed depthwise
       (25 taps, single pad-2 halo) + SiLU -> project 1x1 -> residual ->
       conv_head 1x1 + ReLU -> global average pool.
       All BN folded into the weights at prep time; padded lanes stay exactly zero."""
    HW = Ho * Wo
    P = pool_ref.shape[-1]
    Hp, Wp, _ = halo.shape

    def silu(v):
        return v * jax.nn.sigmoid(v)

    # Re-zero only the never-written halo border each step (the interior is fully
    # overwritten per image below).  Not gated on program_id==0: under "parallel"
    # grid semantics each TensorCore has its own scratch copy.
    halo[pl.ds(0, 2), :, :] = jnp.zeros((2, Wp, P), jnp.float32)
    halo[pl.ds(Ho + 2, Hp - Ho - 2), :, :] = jnp.zeros((Hp - Ho - 2, Wp, P), jnp.float32)
    halo[pl.ds(2, Ho), pl.ds(0, 2), :] = jnp.zeros((Ho, 2, P), jnp.float32)
    halo[pl.ds(2, Ho), pl.ds(Wo + 2, Wp - Wo - 2), :] = (
        jnp.zeros((Ho, Wp - Wo - 2, P), jnp.float32))

    # stem conv3x3/s2 as im2col matmul (+folded BN) + ReLU, M = G*HW rows.
    cols = cols_ref[...].reshape(G * HW, cols_ref.shape[-1])            # bf16
    s = jnp.maximum(
        jnp.dot(cols, sw_ref[...], preferred_element_type=jnp.float32) + B_ref[0], 0.0)
    s16 = s.astype(jnp.bfloat16)        # reused as expand input and residual branch

    # expand 1x1 (+folded BN) + SiLU: one full-width MXU pass for all G images.
    e = silu(jnp.dot(s16, W_ref[0], preferred_element_type=jnp.float32) + B_ref[1])

    # merged mixed depthwise conv: 3x3 and 5x5 groups share one 128-lane slab;
    # 25 unrolled taps (3x3-group lanes have zero weights outside the central window).
    for g in range(G):
        halo[pl.ds(2, Ho), pl.ds(2, Wo), :] = e[g * HW:(g + 1) * HW].reshape(Ho, Wo, P)
        acc = halo[pl.ds(0, Ho), pl.ds(0, Wo), :] * dw_ref[0]
        for t in range(1, 25):
            di, dj = t // 5, t % 5
            acc = acc + halo[pl.ds(di, Ho), pl.ds(dj, Wo), :] * dw_ref[t]
        d_buf[pl.ds(g * HW, HW), :] = silu(
            acc.reshape(HW, P) + B_ref[2]).astype(jnp.bfloat16)

    # project 1x1 (+folded BN), single K=128 pass, residual add with the stem output.
    r = (jnp.dot(d_buf[...], W_ref[1], preferred_element_type=jnp.float32)
         + B_ref[3] + s16.astype(jnp.float32))

    # conv_head 1x1 (+folded BN) + ReLU.
    h = jnp.maximum(
        jnp.dot(r.astype(jnp.bfloat16), W_ref[2], preferred_element_type=jnp.float32)
        + B_ref[4], 0.0)

    # global average pool per image -> [G, 1, P].
    pooled = jnp.concatenate(
        [jnp.mean(h[g * HW:(g + 1) * HW], axis=0, keepdims=True) for g in range(G)],
        axis=0)
    pool_ref[...] = pooled.reshape(G, 1, P)


def fused_backbone(cols, stem_w, W, B, dw, Ho, Wo, G):
    """cols: [N, HW, K] bf16; stem_w: [K, P] bf16; W: [3, P, P] bf16;
    B: [5, 1, P] f32; dw: [25, 1, P] f32 -> pooled [N, 1, P] f32."""
    N, HW, K = cols.shape
    P = W.shape[-1]
    Wp = _round_up(Wo + 4, 8)
    est = (2 * (G * HW * K * 2 + K * P * 2 + 3 * P * P * 2 + 30 * P * 4 + G * P * 4)
           + (Ho + 4) * Wp * P * 4 + G * HW * P * 2       # halo + d_buf scratch
           + 16 * G * HW * P)                             # live f32/bf16 intermediates
    return pl.pallas_call(
        partial(_fused_backbone_kernel, G=G, Ho=Ho, Wo=Wo),
        out_shape=jax.ShapeDtypeStruct((N, 1, P), jnp.float32),
        grid=(N // G,),
        in_specs=[
            pl.BlockSpec((G, HW, K), lambda b: (b, 0, 0)),
            pl.BlockSpec((K, P), lambda b: (0, 0)),
            pl.BlockSpec((3, P, P), lambda b: (0, 0, 0)),
            pl.BlockSpec((5, 1, P), lambda b: (0, 0, 0)),
            pl.BlockSpec((25, 1, P), lambda b: (0, 0, 0)),
        ],
        out_specs=pl.BlockSpec((G, 1, P), lambda b: (b, 0, 0)),
        scratch_shapes=[
            pltpu.VMEM((Ho + 4, Wp, P), jnp.float32),     # shared pad-2 halo
            pltpu.VMEM((G * HW, P), jnp.bfloat16),        # dw output slab (MXU input)
        ],
        compiler_params=pltpu.CompilerParams(
            dimension_semantics=("parallel",),
            vmem_limit_bytes=_vmem_limit(est)),
    )(cols, stem_w, W, B, dw)


def _head_kernel(p_ref, W_ref, B_ref, o_ref):
    # classifier Linear(in_features, 128) then output Linear(128, 2), whole batch at once
    N = p_ref.shape[0]
    P = p_ref.shape[-1]
    pooled = p_ref[...].reshape(N, P).astype(jnp.bfloat16)
    z = jnp.dot(pooled, W_ref[0], preferred_element_type=jnp.float32) + B_ref[0]
    o = (jnp.dot(z.astype(jnp.bfloat16), W_ref[1], preferred_element_type=jnp.float32)
         + B_ref[1])
    o_ref[...] = o.reshape(N, 1, P)


def head_mlp(pooled, Wh, Bh):
    """pooled: [N, 1, P] f32; Wh: [2, P, P] bf16; Bh: [2, 1, P] f32 -> [N, 1, P] f32."""
    N, _, P = pooled.shape
    est = 2 * (N * P * 4 + 2 * P * P * 2 + 2 * P * 4 + N * P * 4) + 12 * N * P
    return pl.pallas_call(
        _head_kernel,
        out_shape=jax.ShapeDtypeStruct((N, 1, P), jnp.float32),
        grid=(1,),
        in_specs=[
            pl.BlockSpec((N, 1, P), lambda i: (0, 0, 0)),
            pl.BlockSpec((2, P, P), lambda i: (0, 0, 0)),
            pl.BlockSpec((2, 1, P), lambda i: (0, 0, 0)),
        ],
        out_specs=pl.BlockSpec((N, 1, P), lambda i: (0, 0, 0)),
        compiler_params=pltpu.CompilerParams(
            dimension_semantics=("arbitrary",),
            vmem_limit_bytes=_vmem_limit(est)),
    )(pooled, Wh, Bh)


# ------------------------------- JAX glue ------------------------------------

def im2col(x, kh, kw, stride, pad):
    """x: [N, H, W, C] -> patches [N, Ho*Wo, kh*kw*C] (tap-major, channel-minor)."""
    N, H, W, C = x.shape
    xp = jnp.pad(x, ((0, 0), (pad, pad), (pad, pad), (0, 0)))
    Ho = (H + 2 * pad - kh) // stride + 1
    Wo = (W + 2 * pad - kw) // stride + 1
    taps = []
    for i in range(kh):
        for j in range(kw):
            taps.append(xp[:, i:i + stride * Ho:stride, j:j + stride * Wo:stride, :])
    patches = jnp.stack(taps, axis=3)                    # [N, Ho, Wo, kh*kw, C]
    return patches.reshape(N, Ho * Wo, kh * kw * C), Ho, Wo


def fold_bn(bn, eps=1e-5):
    scale = bn["gamma"] / jnp.sqrt(bn["var"] + eps)
    bias = bn["beta"] - bn["mean"] * scale
    return scale, bias


def _pad_to(a, shape):
    return jnp.pad(a, [(0, t - s) for s, t in zip(a.shape, shape)])


# ---------------------------- parameter init ---------------------------------

def _bn_init(key, c):
    k1, k2, k3, k4 = jax.random.split(key, 4)
    return {
        "gamma": 1.0 + 0.1 * jax.random.normal(k1, (c,), jnp.float32),
        "beta": 0.05 * jax.random.normal(k2, (c,), jnp.float32),
        "mean": 0.05 * jax.random.normal(k3, (c,), jnp.float32),
        "var": 0.5 + jax.random.uniform(k4, (c,), jnp.float32),
    }


def init_params(key):
    ks = jax.random.split(key, 16)
    p = {}
    p["conv_stem_w"] = 0.1 * jax.random.normal(ks[0], (3 * 3 * C_IN, C_STEM), jnp.float32)
    p["bn1"] = _bn_init(ks[1], C_STEM)
    p["exp_w"] = 0.1 * jax.random.normal(ks[2], (C_STEM, C_EXP), jnp.float32)
    p["bn_exp"] = _bn_init(ks[3], C_EXP)
    p["dw3_w"] = 0.1 * jax.random.normal(ks[4], (3, 3, C3), jnp.float32)   # 3x3 group
    p["dw5_w"] = 0.1 * jax.random.normal(ks[5], (5, 5, C5), jnp.float32)   # 5x5 group
    p["bn_dw"] = _bn_init(ks[6], C_EXP)
    p["proj_w"] = 0.1 * jax.random.normal(ks[7], (C_EXP, C_STEM), jnp.float32)
    p["bn_proj"] = _bn_init(ks[8], C_STEM)
    p["head_w"] = 0.1 * jax.random.normal(ks[9], (C_STEM, C_HEAD), jnp.float32)
    p["bn2"] = _bn_init(ks[10], C_HEAD)
    p["cls_w"] = 0.1 * jax.random.normal(ks[11], (IN_FEATURES, CLS), jnp.float32)
    p["cls_b"] = 0.02 * jax.random.normal(ks[12], (CLS,), jnp.float32)
    p["out_w"] = 0.1 * jax.random.normal(ks[13], (CLS, N_OUT), jnp.float32)
    p["out_b"] = 0.02 * jax.random.normal(ks[14], (N_OUT,), jnp.float32)
    return p


def prep_params(p):
    """Fold BN into weights, merge the two dw groups into one 128-lane slab, pad all
    channel dims to 128 lanes, cast HBM-resident matmul operands to bf16 (padded lanes
    are exactly zero end-to-end)."""
    P = LANE
    q = {}

    # stem conv + bn1 folded
    s, b = fold_bn(p["bn1"])
    q["stem_w"] = _pad_to(p["conv_stem_w"] * s[None, :], (K_STEM, P)).astype(jnp.bfloat16)
    b_stem = _pad_to(b[None, :], (1, P))

    # expand 1x1 + bn folded (both dw groups share one slab: C_EXP = 48 <= 128)
    s, b = fold_bn(p["bn_exp"])
    w_exp = _pad_to(p["exp_w"] * s[None, :], (P, P))
    b_exp = _pad_to(b[None, :], (1, P))

    # mixed depthwise weights, bn folded, merged into one 25-tap per-lane table:
    # the 3x3-group weights are placed at the central 3x3 of the 5x5 window.
    s, b = fold_bn(p["bn_dw"])
    dw3 = p["dw3_w"] * s[None, None, :C3]                 # (3, 3, C3)
    dw5 = p["dw5_w"] * s[None, None, C3:]                 # (5, 5, C5)
    dw3_in5 = jnp.pad(dw3, ((1, 1), (1, 1), (0, 0)))      # (5, 5, C3), zero outer ring
    taps = jnp.concatenate([dw3_in5, dw5], axis=-1).reshape(25, C_EXP)
    q["dw"] = _pad_to(taps[:, None, :], (25, 1, P)).astype(jnp.float32)
    b_dw = _pad_to(b[None, :], (1, P))

    # project 1x1 + bn folded (un-split: one K=128 MXU pass)
    s, b = fold_bn(p["bn_proj"])
    w_proj = _pad_to(p["proj_w"] * s[None, :], (P, P))
    b_proj = _pad_to(b[None, :], (1, P))

    # conv_head + bn2 folded
    s, b = fold_bn(p["bn2"])
    w_head = _pad_to(p["head_w"] * s[None, :], (P, P))
    b_head = _pad_to(b[None, :], (1, P))

    q["W"] = jnp.stack([w_exp, w_proj, w_head]).astype(jnp.bfloat16)
    q["B"] = jnp.stack([b_stem, b_exp, b_dw, b_proj, b_head]).astype(jnp.float32)

    # classifier + output head (batched over N in a separate tiny kernel)
    q["W_head"] = jnp.stack([_pad_to(p["cls_w"], (P, P)),
                             _pad_to(p["out_w"], (P, P))]).astype(jnp.bfloat16)
    q["B_head"] = jnp.stack([_pad_to(p["cls_b"][None, :], (1, P)),
                             _pad_to(p["out_b"][None, :], (1, P))]).astype(jnp.float32)
    return q


# ------------------------------ forward pass ---------------------------------

def mixnet_forward(x_nchw, q):
    x = jnp.transpose(x_nchw, (0, 2, 3, 1)).astype(jnp.float32)      # NCHW -> NHWC
    N = x.shape[0]

    # conv_stem patches (im2col, K padded 27->32); the stem matmul itself is fused
    # into the backbone kernel so its 128-lane activation never touches HBM.
    cols, Ho, Wo = im2col(x, 3, 3, stride=2, pad=1)                  # [N, HW, 27]
    cols = _pad_to(cols, (N, Ho * Wo, K_STEM)).astype(jnp.bfloat16)

    G = _pick_group(N)
    pooled = fused_backbone(cols, q["stem_w"], q["W"], q["B"], q["dw"], Ho, Wo, G)
    out = head_mlp(pooled, q["W_head"], q["B_head"])                 # [N, 1, 128]
    return out.reshape(N, LANE)[:, :N_OUT]                           # [N, 2]


# --------------------------------- main ---------------------------------------

if __name__ == "__main__":
    key = jax.random.PRNGKey(0)
    k_x, k_p = jax.random.split(key)
    x = jax.random.normal(k_x, (2, C_IN, 16, 16), jnp.float32)       # NCHW like PyTorch
    params = init_params(k_p)
    q = prep_params(params)

    out = jax.jit(mixnet_forward)(x, q)
    out = jax.block_until_ready(out)
    assert out.shape == (2, 2) and out.dtype == jnp.float32
    print("KERNEL_OK")
</pallas_src>

<mosaic_0001>
module attributes {stable_mosaic.version = 11 : i64} {
  func.func @_head_kernel(%arg0: i32, %arg1: memref<2x1x128xf32, #tpu.memory_space<vmem>>, %arg2: memref<2x128x128xbf16, #tpu.memory_space<vmem>>, %arg3: memref<2x1x128xf32, #tpu.memory_space<vmem>>, %arg4: memref<2x1x128xf32, #tpu.memory_space<vmem>>) attributes {dimension_semantics = [#tpu.dimension_semantics<arbitrary>], iteration_bounds = array<i64: 1>, scalar_prefetch = 0 : i64, scratch_operands = 0 : i64, tpu.core_type = #tpu.core_type<tc>, window_params = [{pipeline_mode = #tpu.pipeline_mode<synchronous>, transform_indices = @transform_0, window_bounds = array<i64: 2, 1, 128>}, {pipeline_mode = #tpu.pipeline_mode<synchronous>, transform_indices = @transform_1, window_bounds = array<i64: 2, 128, 128>}, {pipeline_mode = #tpu.pipeline_mode<synchronous>, transform_indices = @transform_2, window_bounds = array<i64: 2, 1, 128>}, {pipeline_mode = #tpu.pipeline_mode<synchronous>, transform_indices = @transform_3, window_bounds = array<i64: 2, 1, 128>}]} {
    %c0 = arith.constant 0 : index
    %c0_0 = arith.constant 0 : index
    %c0_1 = arith.constant 0 : index
    %0 = vector.load %arg1[%c0, %c0_0, %c0_1] : memref<2x1x128xf32, #tpu.memory_space<vmem>>, vector<2x1x128xf32>
    %1 = vector.shape_cast %0 : vector<2x1x128xf32> to vector<2x128xf32>
    %2 = arith.truncf %1 : vector<2x128xf32> to vector<2x128xbf16>
    %c0_2 = arith.constant 0 : index
    %c0_3 = arith.constant 0 : index
    %c0_4 = arith.constant 0 : index
    %3 = vector.load %arg2[%c0_2, %c0_3, %c0_4] : memref<2x128x128xbf16, #tpu.memory_space<vmem>>, vector<1x128x128xbf16>
    %4 = vector.shape_cast %3 : vector<1x128x128xbf16> to vector<128x128xbf16>
    %cst = arith.constant dense<0.000000e+00> : vector<2x128xf32>
    %5 = tpu.matmul %2, %4, %cst {dimension_numbers = #tpu.dot_dimension_numbers<[1], [0], [0], [1], [0, 0, 1, 1], [], []>} : vector<2x128xbf16>, vector<128x128xbf16>, vector<2x128xf32> -> vector<2x128xf32>
    %c0_5 = arith.constant 0 : index
    %c0_6 = arith.constant 0 : index
    %c0_7 = arith.constant 0 : index
    %6 = vector.load %arg3[%c0_5, %c0_6, %c0_7] : memref<2x1x128xf32, #tpu.memory_space<vmem>>, vector<1x1x128xf32>
    %7 = vector.shape_cast %6 : vector<1x1x128xf32> to vector<1x128xf32>
    %8 = vector.broadcast %7 : vector<1x128xf32> to vector<2x128xf32>
    %9 = arith.addf %5, %8 : vector<2x128xf32>
    %10 = arith.truncf %9 : vector<2x128xf32> to vector<2x128xbf16>
    %c1 = arith.constant 1 : index
    %c0_8 = arith.constant 0 : index
    %c0_9 = arith.constant 0 : index
    %11 = vector.load %arg2[%c1, %c0_8, %c0_9] : memref<2x128x128xbf16, #tpu.memory_space<vmem>>, vector<1x128x128xbf16>
    %12 = vector.shape_cast %11 : vector<1x128x128xbf16> to vector<128x128xbf16>
    %cst_10 = arith.constant dense<0.000000e+00> : vector<2x128xf32>
    %13 = tpu.matmul %10, %12, %cst_10 {dimension_numbers = #tpu.dot_dimension_numbers<[1], [0], [0], [1], [0, 0, 1, 1], [], []>} : vector<2x128xbf16>, vector<128x128xbf16>, vector<2x128xf32> -> vector<2x128xf32>
    %c1_11 = arith.constant 1 : index
    %c0_12 = arith.constant 0 : index
    %c0_13 = arith.constant 0 : index
    %14 = vector.load %arg3[%c1_11, %c0_12, %c0_13] : memref<2x1x128xf32, #tpu.memory_space<vmem>>, vector<1x1x128xf32>
    %15 = vector.shape_cast %14 : vector<1x1x128xf32> to vector<1x128xf32>
    %16 = vector.broadcast %15 : vector<1x128xf32> to vector<2x128xf32>
    %17 = arith.addf %13, %16 : vector<2x128xf32>
    %18 = vector.shape_cast %17 : vector<2x128xf32> to vector<2x1x128xf32>
    %c0_14 = arith.constant 0 : index
    %c0_15 = arith.constant 0 : index
    %c0_16 = arith.constant 0 : index
    %19 = vector.load %arg4[%c0_14, %c0_15, %c0_16] : memref<2x1x128xf32, #tpu.memory_space<vmem>>, vector<2x1x128xf32>
    tpu.vector_store %arg4[%c0_14, %c0_15, %c0_16], %18 {strides = array<i32>} : memref<2x1x128xf32, #tpu.memory_space<vmem>>, vector<2x1x128xf32>,
    return
  }
  func.func @transform_0(%arg0: i32) -> (i32, i32, i32) {
    %c0_i32 = arith.constant 0 : i32
    %c0_i32_0 = arith.constant 0 : i32
    %c0_i32_1 = arith.constant 0 : i32
    %c0_i32_2 = arith.constant 0 : i32
    return %c0_i32, %c0_i32_0, %c0_i32_1 : i32, i32, i32
  }
  func.func @transform_1(%arg0: i32) -> (i32, i32, i32) {
    %c0_i32 = arith.constant 0 : i32
    %c0_i32_0 = arith.constant 0 : i32
    %c0_i32_1 = arith.constant 0 : i32
    %c0_i32_2 = arith.constant 0 : i32
    return %c0_i32, %c0_i32_0, %c0_i32_1 : i32, i32, i32
  }
  func.func @transform_2(%arg0: i32) -> (i32, i32, i32) {
    %c0_i32 = arith.constant 0 : i32
    %c0_i32_0 = arith.constant 0 : i32
    %c0_i32_1 = arith.constant 0 : i32
    %c0_i32_2 = arith.constant 0 : i32
    return %c0_i32, %c0_i32_0, %c0_i32_1 : i32, i32, i32
  }
  func.func @transform_3(%arg0: i32) -> (i32, i32, i32) {
    %c0_i32 = arith.constant 0 : i32
    %c0_i32_0 = arith.constant 0 : i32
    %c0_i32_1 = arith.constant 0 : i32
    %c0_i32_2 = arith.constant 0 : i32
    return %c0_i32, %c0_i32_0, %c0_i32_1 : i32, i32, i32
  }
}

module attributes {stable_mosaic.version = 11 : i64} {
  func.func @_fused_backbone_kernel(%arg0: i32, %arg1: memref<1x64x32xbf16, #tpu.memory_space<vmem>>, %arg2: memref<32x128xbf16, #tpu.memory_space<vmem>>, %arg3: memref<3x128x128xbf16, #tpu.memory_space<vmem>>, %arg4: memref<5x1x128xf32, #tpu.memory_space<vmem>>, %arg5: memref<25x1x128xf32, #tpu.memory_space<vmem>>, %arg6: memref<1x1x128xf32, #tpu.memory_space<vmem>>, %arg7: memref<12x16x128xf32, #tpu.memory_space<vmem>>, %arg8: memref<64x128xbf16, #tpu.memory_space<vmem>>) attributes {dimension_semantics = [#tpu.dimension_semantics<parallel>], iteration_bounds = array<i64: 2>, scalar_prefetch = 0 : i64, scratch_operands = 2 : i64, tpu.core_type = #tpu.core_type<tc>, window_params = [{transform_indices = @transform_0, window_bounds = array<i64: 1, 64, 32>}, {pipeline_mode = #tpu.pipeline_mode<synchronous>, transform_indices = @transform_1, window_bounds = array<i64: 32, 128>}, {pipeline_mode = #tpu.pipeline_mode<synchronous>, transform_indices = @transform_2, window_bounds = array<i64: 3, 128, 128>}, {pipeline_mode = #tpu.pipeline_mode<synchronous>, transform_indices = @transform_3, window_bounds = array<i64: 5, 1, 128>}, {pipeline_mode = #tpu.pipeline_mode<synchronous>, transform_indices = @transform_4, window_bounds = array<i64: 25, 1, 128>}, {transform_indices = @transform_5, window_bounds = array<i64: 1, 1, 128>}]} {
    %cst = arith.constant 0.000000e+00 : f32
    %0 = vector.broadcast %cst : f32 to vector<2x16x128xf32>
    %c0 = arith.constant 0 : index
    %c0_0 = arith.constant 0 : index
    %c0_1 = arith.constant 0 : index
    %1 = vector.load %arg7[%c0, %c0_0, %c0_1] : memref<12x16x128xf32, #tpu.memory_space<vmem>>, vector<2x16x128xf32>
    tpu.vector_store %arg7[%c0, %c0_0, %c0_1], %0 {strides = array<i32>} : memref<12x16x128xf32, #tpu.memory_space<vmem>>, vector<2x16x128xf32>,
    %cst_2 = arith.constant 0.000000e+00 : f32
    %2 = vector.broadcast %cst_2 : f32 to vector<2x16x128xf32>
    %c10 = arith.constant 10 : index
    %c0_3 = arith.constant 0 : index
    %c0_4 = arith.constant 0 : index
    %3 = vector.load %arg7[%c10, %c0_3, %c0_4] : memref<12x16x128xf32, #tpu.memory_space<vmem>>, vector<2x16x128xf32>
    tpu.vector_store %arg7[%c10, %c0_3, %c0_4], %2 {strides = array<i32>} : memref<12x16x128xf32, #tpu.memory_space<vmem>>, vector<2x16x128xf32>,
    %cst_5 = arith.constant 0.000000e+00 : f32
    %4 = vector.broadcast %cst_5 : f32 to vector<8x2x128xf32>
    %c2 = arith.constant 2 : index
    %c0_6 = arith.constant 0 : index
    %c0_7 = arith.constant 0 : index
    %5 = vector.load %arg7[%c2, %c0_6, %c0_7] : memref<12x16x128xf32, #tpu.memory_space<vmem>>, vector<8x2x128xf32>
    tpu.vector_store %arg7[%c2, %c0_6, %c0_7], %4 {strides = array<i32>} : memref<12x16x128xf32, #tpu.memory_space<vmem>>, vector<8x2x128xf32>,
    %cst_8 = arith.constant 0.000000e+00 : f32
    %6 = vector.broadcast %cst_8 : f32 to vector<8x6x128xf32>
    %c2_9 = arith.constant 2 : index
    %c10_10 = arith.constant 10 : index
    %c0_11 = arith.constant 0 : index
    %7 = vector.load %arg7[%c2_9, %c10_10, %c0_11] : memref<12x16x128xf32, #tpu.memory_space<vmem>>, vector<8x6x128xf32>
    tpu.vector_store %arg7[%c2_9, %c10_10, %c0_11], %6 {strides = array<i32>} : memref<12x16x128xf32, #tpu.memory_space<vmem>>, vector<8x6x128xf32>,
    %c0_12 = arith.constant 0 : index
    %c0_13 = arith.constant 0 : index
    %c0_14 = arith.constant 0 : index
    %8 = vector.load %arg1[%c0_12, %c0_13, %c0_14] : memref<1x64x32xbf16, #tpu.memory_space<vmem>>, vector<1x64x32xbf16>
    %9 = vector.shape_cast %8 : vector<1x64x32xbf16> to vector<64x32xbf16>
    %c0_15 = arith.constant 0 : index
    %c0_16 = arith.constant 0 : index
    %10 = vector.load %arg2[%c0_15, %c0_16] : memref<32x128xbf16, #tpu.memory_space<vmem>>, vector<32x128xbf16>
    %cst_17 = arith.constant dense<0.000000e+00> : vector<64x128xf32>
    %11 = tpu.matmul %9, %10, %cst_17 {dimension_numbers = #tpu.dot_dimension_numbers<[1], [0], [0], [1], [0, 0, 1, 1], [], []>} : vector<64x32xbf16>, vector<32x128xbf16>, vector<64x128xf32> -> vector<64x128xf32>
    %c0_18 = arith.constant 0 : index
    %c0_19 = arith.constant 0 : index
    %c0_20 = arith.constant 0 : index
    %12 = vector.load %arg4[%c0_18, %c0_19, %c0_20] : memref<5x1x128xf32, #tpu.memory_space<vmem>>, vector<1x1x128xf32>
    %13 = vector.shape_cast %12 : vector<1x1x128xf32> to vector<1x128xf32>
    %14 = vector.broadcast %13 : vector<1x128xf32> to vector<64x128xf32>
    %15 = arith.addf %11, %14 : vector<64x128xf32>
    %cst_21 = arith.constant 0.000000e+00 : f32
    %16 = vector.broadcast %cst_21 : f32 to vector<64x128xf32>
    %17 = arith.maximumf %15, %16 : vector<64x128xf32>
    %18 = arith.truncf %17 : vector<64x128xf32> to vector<64x128xbf16>
    %c0_22 = arith.constant 0 : index
    %c0_23 = arith.constant 0 : index
    %c0_24 = arith.constant 0 : index
    %19 = vector.load %arg3[%c0_22, %c0_23, %c0_24] : memref<3x128x128xbf16, #tpu.memory_space<vmem>>, vector<1x128x128xbf16>
    %20 = vector.shape_cast %19 : vector<1x128x128xbf16> to vector<128x128xbf16>
    %cst_25 = arith.constant dense<0.000000e+00> : vector<64x128xf32>
    %21 = tpu.matmul %18, %20, %cst_25 {dimension_numbers = #tpu.dot_dimension_numbers<[1], [0], [0], [1], [0, 0, 1, 1], [], []>} : vector<64x128xbf16>, vector<128x128xbf16>, vector<64x128xf32> -> vector<64x128xf32>
    %c1 = arith.constant 1 : index
    %c0_26 = arith.constant 0 : index
    %c0_27 = arith.constant 0 : index
    %22 = vector.load %arg4[%c1, %c0_26, %c0_27] : memref<5x1x128xf32, #tpu.memory_space<vmem>>, vector<1x1x128xf32>
    %23 = vector.shape_cast %22 : vector<1x1x128xf32> to vector<1x128xf32>
    %24 = vector.broadcast %23 : vector<1x128xf32> to vector<64x128xf32>
    %25 = arith.addf %21, %24 : vector<64x128xf32>
    %26 = arith.negf %25 : vector<64x128xf32>
    %27 = math.exp %26 : vector<64x128xf32>
    %cst_28 = arith.constant 1.000000e+00 : f32
    %28 = vector.broadcast %cst_28 : f32 to vector<64x128xf32>
    %29 = arith.addf %28, %27 : vector<64x128xf32>
    %30 = arith.divf %28, %29 : vector<64x128xf32>
    %31 = arith.mulf %25, %30 : vector<64x128xf32>
    %32 = vector.shape_cast %31 : vector<64x128xf32> to vector<8x8x128xf32>
    %c2_29 = arith.constant 2 : index
    %c2_30 = arith.constant 2 : index
    %c0_31 = arith.constant 0 : index
    %33 = vector.load %arg7[%c2_29, %c2_30, %c0_31] : memref<12x16x128xf32, #tpu.memory_space<vmem>>, vector<8x8x128xf32>
    tpu.vector_store %arg7[%c2_29, %c2_30, %c0_31], %32 {strides = array<i32>} : memref<12x16x128xf32, #tpu.memory_space<vmem>>, vector<8x8x128xf32>,
    %c0_32 = arith.constant 0 : index
    %c0_33 = arith.constant 0 : index
    %c0_34 = arith.constant 0 : index
    %34 = vector.load %arg7[%c0_32, %c0_33, %c0_34] : memref<12x16x128xf32, #tpu.memory_space<vmem>>, vector<8x8x128xf32>
    %c0_35 = arith.constant 0 : index
    %c0_36 = arith.constant 0 : index
    %c0_37 = arith.constant 0 : index
    %35 = vector.load %arg5[%c0_35, %c0_36, %c0_37] : memref<25x1x128xf32, #tpu.memory_space<vmem>>, vector<1x1x128xf32>
    %36 = vector.shape_cast %35 : vector<1x1x128xf32> to vector<1x128xf32>
    %37 = vector.shape_cast %36 : vector<1x128xf32> to vector<1x1x128xf32>
    %38 = vector.broadcast %37 : vector<1x1x128xf32> to vector<8x8x128xf32>
    %39 = arith.mulf %34, %38 : vector<8x8x128xf32>
    %c0_38 = arith.constant 0 : index
    %c1_39 = arith.constant 1 : index
    %c0_40 = arith.constant 0 : index
    %40 = vector.load %arg7[%c0_38, %c1_39, %c0_40] : memref<12x16x128xf32, #tpu.memory_space<vmem>>, vector<8x8x128xf32>
    %c1_41 = arith.constant 1 : index
    %c0_42 = arith.constant 0 : index
    %c0_43 = arith.constant 0 : index
    %41 = vector.load %arg5[%c1_41, %c0_42, %c0_43] : memref<25x1x128xf32, #tpu.memory_space<vmem>>, vector<1x1x128xf32>
    %42 = vector.shape_cast %41 : vector<1x1x128xf32> to vector<1x128xf32>
    %43 = vector.shape_cast %42 : vector<1x128xf32> to vector<1x1x128xf32>
    %44 = vector.broadcast %43 : vector<1x1x128xf32> to vector<8x8x128xf32>
    %45 = arith.mulf %40, %44 : vector<8x8x128xf32>
    %46 = arith.addf %39, %45 : vector<8x8x128xf32>
    %c0_44 = arith.constant 0 : index
    %c2_45 = arith.constant 2 : index
    %c0_46 = arith.constant 0 : index
    %47 = vector.load %arg7[%c0_44, %c2_45, %c0_46] : memref<12x16x128xf32, #tpu.memory_space<vmem>>, vector<8x8x128xf32>
    %c2_47 = arith.constant 2 : index
    %c0_48 = arith.constant 0 : index
    %c0_49 = arith.constant 0 : index
    %48 = vector.load %arg5[%c2_47, %c0_48, %c0_49] : memref<25x1x128xf32, #tpu.memory_space<vmem>>, vector<1x1x128xf32>
    %49 = vector.shape_cast %48 : vector<1x1x128xf32> to vector<1x128xf32>
    %50 = vector.shape_cast %49 : vector<1x128xf32> to vector<1x1x128xf32>
    %51 = vector.broadcast %50 : vector<1x1x128xf32> to vector<8x8x128xf32>
    %52 = arith.mulf %47, %51 : vector<8x8x128xf32>
    %53 = arith.addf %46, %52 : vector<8x8x128xf32>
    %c0_50 = arith.constant 0 : index
    %c3 = arith.constant 3 : index
    %c0_51 = arith.constant 0 : index
    %54 = vector.load %arg7[%c0_50, %c3, %c0_51] : memref<12x16x128xf32, #tpu.memory_space<vmem>>, vector<8x8x128xf32>
    %c3_52 = arith.constant 3 : index
    %c0_53 = arith.constant 0 : index
    %c0_54 = arith.constant 0 : index
    %55 = vector.load %arg5[%c3_52, %c0_53, %c0_54] : memref<25x1x128xf32, #tpu.memory_space<vmem>>, vector<1x1x128xf32>
    %56 = vector.shape_cast %55 : vector<1x1x128xf32> to vector<1x128xf32>
    %57 = vector.shape_cast %56 : vector<1x128xf32> to vector<1x1x128xf32>
    %58 = vector.broadcast %57 : vector<1x1x128xf32> to vector<8x8x128xf32>
    %59 = arith.mulf %54, %58 : vector<8x8x128xf32>
    %60 = arith.addf %53, %59 : vector<8x8x128xf32>
    %c0_55 = arith.constant 0 : index
    %c4 = arith.constant 4 : index
    %c0_56 = arith.constant 0 : index
    %61 = vector.load %arg7[%c0_55, %c4, %c0_56] : memref<12x16x128xf32, #tpu.memory_space<vmem>>, vector<8x8x128xf32>
    %c4_57 = arith.constant 4 : index
    %c0_58 = arith.constant 0 : index
    %c0_59 = arith.constant 0 : index
    %62 = vector.load %arg5[%c4_57, %c0_58, %c0_59] : memref<25x1x128xf32, #tpu.memory_space<vmem>>, vector<1x1x128xf32>
    %63 = vector.shape_cast %62 : vector<1x1x128xf32> to vector<1x128xf32>
    %64 = vector.shape_cast %63 : vector<1x128xf32> to vector<1x1x128xf32>
    %65 = vector.broadcast %64 : vector<1x1x128xf32> to vector<8x8x128xf32>
    %66 = arith.mulf %61, %65 : vector<8x8x128xf32>
    %67 = arith.addf %60, %66 : vector<8x8x128xf32>
    %c1_60 = arith.constant 1 : index
    %c0_61 = arith.constant 0 : index
    %c0_62 = arith.constant 0 : index
    %68 = vector.load %arg7[%c1_60, %c0_61, %c0_62] : memref<12x16x128xf32, #tpu.memory_space<vmem>>, vector<8x8x128xf32>
    %c5 = arith.constant 5 : index
    %c0_63 = arith.constant 0 : index
    %c0_64 = arith.constant 0 : index
    %69 = vector.load %arg5[%c5, %c0_63, %c0_64] : memref<25x1x128xf32, #tpu.memory_space<vmem>>, vector<1x1x128xf32>
    %70 = vector.shape_cast %69 : vector<1x1x128xf32> to vector<1x128xf32>
    %71 = vector.shape_cast %70 : vector<1x128xf32> to vector<1x1x128xf32>
    %72 = vector.broadcast %71 : vector<1x1x128xf32> to vector<8x8x128xf32>
    %73 = arith.mulf %68, %72 : vector<8x8x128xf32>
    %74 = arith.addf %67, %73 : vector<8x8x128xf32>
    %c1_65 = arith.constant 1 : index
    %c1_66 = arith.constant 1 : index
    %c0_67 = arith.constant 0 : index
    %75 = vector.load %arg7[%c1_65, %c1_66, %c0_67] : memref<12x16x128xf32, #tpu.memory_space<vmem>>, vector<8x8x128xf32>
    %c6 = arith.constant 6 : index
    %c0_68 = arith.constant 0 : index
    %c0_69 = arith.constant 0 : index
    %76 = vector.load %arg5[%c6, %c0_68, %c0_69] : memref<25x1x128xf32, #tpu.memory_space<vmem>>, vector<1x1x128xf32>
    %77 = vector.shape_cast %76 : vector<1x1x128xf32> to vector<1x128xf32>
    %78 = vector.shape_cast %77 : vector<1x128xf32> to vector<1x1x128xf32>
    %79 = vector.broadcast %78 : vector<1x1x128xf32> to vector<8x8x128xf32>
    %80 = arith.mulf %75, %79 : vector<8x8x128xf32>
    %81 = arith.addf %74, %80 : vector<8x8x128xf32>
    %c1_70 = arith.constant 1 : index
    %c2_71 = arith.constant 2 : index
    %c0_72 = arith.constant 0 : index
    %82 = vector.load %arg7[%c1_70, %c2_71, %c0_72] : memref<12x16x128xf32, #tpu.memory_space<vmem>>, vector<8x8x128xf32>
    %c7 = arith.constant 7 : index
    %c0_73 = arith.constant 0 : index
    %c0_74 = arith.constant 0 : index
    %83 = vector.load %arg5[%c7, %c0_73, %c0_74] : memref<25x1x128xf32, #tpu.memory_space<vmem>>, vector<1x1x128xf32>
    %84 = vector.shape_cast %83 : vector<1x1x128xf32> to vector<1x128xf32>
    %85 = vector.shape_cast %84 : vector<1x128xf32> to vector<1x1x128xf32>
    %86 = vector.broadcast %85 : vector<1x1x128xf32> to vector<8x8x128xf32>
    %87 = arith.mulf %82, %86 : vector<8x8x128xf32>
    %88 = arith.addf %81, %87 : vector<8x8x128xf32>
    %c1_75 = arith.constant 1 : index
    %c3_76 = arith.constant 3 : index
    %c0_77 = arith.constant 0 : index
    %89 = vector.load %arg7[%c1_75, %c3_76, %c0_77] : memref<12x16x128xf32, #tpu.memory_space<vmem>>, vector<8x8x128xf32>
    %c8 = arith.constant 8 : index
    %c0_78 = arith.constant 0 : index
    %c0_79 = arith.constant 0 : index
    %90 = vector.load %arg5[%c8, %c0_78, %c0_79] : memref<25x1x128xf32, #tpu.memory_space<vmem>>, vector<1x1x128xf32>
    %91 = vector.shape_cast %90 : vector<1x1x128xf32> to vector<1x128xf32>
    %92 = vector.shape_cast %91 : vector<1x128xf32> to vector<1x1x128xf32>
    %93 = vector.broadcast %92 : vector<1x1x128xf32> to vector<8x8x128xf32>
    %94 = arith.mulf %89, %93 : vector<8x8x128xf32>
    %95 = arith.addf %88, %94 : vector<8x8x128xf32>
    %c1_80 = arith.constant 1 : index
    %c4_81 = arith.constant 4 : index
    %c0_82 = arith.constant 0 : index
    %96 = vector.load %arg7[%c1_80, %c4_81, %c0_82] : memref<12x16x128xf32, #tpu.memory_space<vmem>>, vector<8x8x128xf32>
    %c9 = arith.constant 9 : index
    %c0_83 = arith.constant 0 : index
    %c0_84 = arith.constant 0 : index
    %97 = vector.load %arg5[%c9, %c0_83, %c0_84] : memref<25x1x128xf32, #tpu.memory_space<vmem>>, vector<1x1x128xf32>
    %98 = vector.shape_cast %97 : vector<1x1x128xf32> to vector<1x128xf32>
    %99 = vector.shape_cast %98 : vector<1x128xf32> to vector<1x1x128xf32>
    %100 = vector.broadcast %99 : vector<1x1x128xf32> to vector<8x8x128xf32>
    %101 = arith.mulf %96, %100 : vector<8x8x128xf32>
    %102 = arith.addf %95, %101 : vector<8x8x128xf32>
    %c2_85 = arith.constant 2 : index
    %c0_86 = arith.constant 0 : index
    %c0_87 = arith.constant 0 : index
    %103 = vector.load %arg7[%c2_85, %c0_86, %c0_87] : memref<12x16x128xf32, #tpu.memory_space<vmem>>, vector<8x8x128xf32>
    %c10_88 = arith.constant 10 : index
    %c0_89 = arith.constant 0 : index
    %c0_90 = arith.constant 0 : index
    %104 = vector.load %arg5[%c10_88, %c0_89, %c0_90] : memref<25x1x128xf32, #tpu.memory_space<vmem>>, vector<1x1x128xf32>
    %105 = vector.shape_cast %104 : vector<1x1x128xf32> to vector<1x128xf32>
    %106 = vector.shape_cast %105 : vector<1x128xf32> to vector<1x1x128xf32>
    %107 = vector.broadcast %106 : vector<1x1x128xf32> to vector<8x8x128xf32>
    %108 = arith.mulf %103, %107 : vector<8x8x128xf32>
    %109 = arith.addf %102, %108 : vector<8x8x128xf32>
    %c2_91 = arith.constant 2 : index
    %c1_92 = arith.constant 1 : index
    %c0_93 = arith.constant 0 : index
    %110 = vector.load %arg7[%c2_91, %c1_92, %c0_93] : memref<12x16x128xf32, #tpu.memory_space<vmem>>, vector<8x8x128xf32>
    %c11 = arith.constant 11 : index
    %c0_94 = arith.constant 0 : index
    %c0_95 = arith.constant 0 : index
    %111 = vector.load %arg5[%c11, %c0_94, %c0_95] : memref<25x1x128xf32, #tpu.memory_space<vmem>>, vector<1x1x128xf32>
    %112 = vector.shape_cast %111 : vector<1x1x128xf32> to vector<1x128xf32>
    %113 = vector.shape_cast %112 : vector<1x128xf32> to vector<1x1x128xf32>
    %114 = vector.broadcast %113 : vector<1x1x128xf32> to vector<8x8x128xf32>
    %115 = arith.mulf %110, %114 : vector<8x8x128xf32>
    %116 = arith.addf %109, %115 : vector<8x8x128xf32>
    %c2_96 = arith.constant 2 : index
    %c2_97 = arith.constant 2 : index
    %c0_98 = arith.constant 0 : index
    %117 = vector.load %arg7[%c2_96, %c2_97, %c0_98] : memref<12x16x128xf32, #tpu.memory_space<vmem>>, vector<8x8x128xf32>
    %c12 = arith.constant 12 : index
    %c0_99 = arith.constant 0 : index
    %c0_100 = arith.constant 0 : index
    %118 = vector.load %arg5[%c12, %c0_99, %c0_100] : memref<25x1x128xf32, #tpu.memory_space<vmem>>, vector<1x1x128xf32>
    %119 = vector.shape_cast %118 : vector<1x1x128xf32> to vector<1x128xf32>
    %120 = vector.shape_cast %119 : vector<1x128xf32> to vector<1x1x128xf32>
    %121 = vector.broadcast %120 : vector<1x1x128xf32> to vector<8x8x128xf32>
    %122 = arith.mulf %117, %121 : vector<8x8x128xf32>
    %123 = arith.addf %116, %122 : vector<8x8x128xf32>
    %c2_101 = arith.constant 2 : index
    %c3_102 = arith.constant 3 : index
    %c0_103 = arith.constant 0 : index
    %124 = vector.load %arg7[%c2_101, %c3_102, %c0_103] : memref<12x16x128xf32, #tpu.memory_space<vmem>>, vector<8x8x128xf32>
    %c13 = arith.constant 13 : index
    %c0_104 = arith.constant 0 : index
    %c0_105 = arith.constant 0 : index
    %125 = vector.load %arg5[%c13, %c0_104, %c0_105] : memref<25x1x128xf32, #tpu.memory_space<vmem>>, vector<1x1x128xf32>
    %126 = vector.shape_cast %125 : vector<1x1x128xf32> to vector<1x128xf32>
    %127 = vector.shape_cast %126 : vector<1x128xf32> to vector<1x1x128xf32>
    %128 = vector.broadcast %127 : vector<1x1x128xf32> to vector<8x8x128xf32>
    %129 = arith.mulf %124, %128 : vector<8x8x128xf32>
    %130 = arith.addf %123, %129 : vector<8x8x128xf32>
    %c2_106 = arith.constant 2 : index
    %c4_107 = arith.constant 4 : index
    %c0_108 = arith.constant 0 : index
    %131 = vector.load %arg7[%c2_106, %c4_107, %c0_108] : memref<12x16x128xf32, #tpu.memory_space<vmem>>, vector<8x8x128xf32>
    %c14 = arith.constant 14 : index
    %c0_109 = arith.constant 0 : index
    %c0_110 = arith.constant 0 : index
    %132 = vector.load %arg5[%c14, %c0_109, %c0_110] : memref<25x1x128xf32, #tpu.memory_space<vmem>>, vector<1x1x128xf32>
    %133 = vector.shape_cast %132 : vector<1x1x128xf32> to vector<1x128xf32>
    %134 = vector.shape_cast %133 : vector<1x128xf32> to vector<1x1x128xf32>
    %135 = vector.broadcast %134 : vector<1x1x128xf32> to vector<8x8x128xf32>
    %136 = arith.mulf %131, %135 : vector<8x8x128xf32>
    %137 = arith.addf %130, %136 : vector<8x8x128xf32>
    %c3_111 = arith.constant 3 : index
    %c0_112 = arith.constant 0 : index
    %c0_113 = arith.constant 0 : index
    %138 = vector.load %arg7[%c3_111, %c0_112, %c0_113] : memref<12x16x128xf32, #tpu.memory_space<vmem>>, vector<8x8x128xf32>
    %c15 = arith.constant 15 : index
    %c0_114 = arith.constant 0 : index
    %c0_115 = arith.constant 0 : index
    %139 = vector.load %arg5[%c15, %c0_114, %c0_115] : memref<25x1x128xf32, #tpu.memory_space<vmem>>, vector<1x1x128xf32>
    %140 = vector.shape_cast %139 : vector<1x1x128xf32> to vector<1x128xf32>
    %141 = vector.shape_cast %140 : vector<1x128xf32> to vector<1x1x128xf32>
    %142 = vector.broadcast %141 : vector<1x1x128xf32> to vector<8x8x128xf32>
    %143 = arith.mulf %138, %142 : vector<8x8x128xf32>
    %144 = arith.addf %137, %143 : vector<8x8x128xf32>
    %c3_116 = arith.constant 3 : index
    %c1_117 = arith.constant 1 : index
    %c0_118 = arith.constant 0 : index
    %145 = vector.load %arg7[%c3_116, %c1_117, %c0_118] : memref<12x16x128xf32, #tpu.memory_space<vmem>>, vector<8x8x128xf32>
    %c16 = arith.constant 16 : index
    %c0_119 = arith.constant 0 : index
    %c0_120 = arith.constant 0 : index
    %146 = vector.load %arg5[%c16, %c0_119, %c0_120] : memref<25x1x128xf32, #tpu.memory_space<vmem>>, vector<1x1x128xf32>
    %147 = vector.shape_cast %146 : vector<1x1x128xf32> to vector<1x128xf32>
    %148 = vector.shape_cast %147 : vector<1x128xf32> to vector<1x1x128xf32>
    %149 = vector.broadcast %148 : vector<1x1x128xf32> to vector<8x8x128xf32>
    %150 = arith.mulf %145, %149 : vector<8x8x128xf32>
    %151 = arith.addf %144, %150 : vector<8x8x128xf32>
    %c3_121 = arith.constant 3 : index
    %c2_122 = arith.constant 2 : index
    %c0_123 = arith.constant 0 : index
    %152 = vector.load %arg7[%c3_121, %c2_122, %c0_123] : memref<12x16x128xf32, #tpu.memory_space<vmem>>, vector<8x8x128xf32>
    %c17 = arith.constant 17 : index
    %c0_124 = arith.constant 0 : index
    %c0_125 = arith.constant 0 : index
    %153 = vector.load %arg5[%c17, %c0_124, %c0_125] : memref<25x1x128xf32, #tpu.memory_space<vmem>>, vector<1x1x128xf32>
    %154 = vector.shape_cast %153 : vector<1x1x128xf32> to vector<1x128xf32>
    %155 = vector.shape_cast %154 : vector<1x128xf32> to vector<1x1x128xf32>
    %156 = vector.broadcast %155 : vector<1x1x128xf32> to vector<8x8x128xf32>
    %157 = arith.mulf %152, %156 : vector<8x8x128xf32>
    %158 = arith.addf %151, %157 : vector<8x8x128xf32>
    %c3_126 = arith.constant 3 : index
    %c3_127 = arith.constant 3 : index
    %c0_128 = arith.constant 0 : index
    %159 = vector.load %arg7[%c3_126, %c3_127, %c0_128] : memref<12x16x128xf32, #tpu.memory_space<vmem>>, vector<8x8x128xf32>
    %c18 = arith.constant 18 : index
    %c0_129 = arith.constant 0 : index
    %c0_130 = arith.constant 0 : index
    %160 = vector.load %arg5[%c18, %c0_129, %c0_130] : memref<25x1x128xf32, #tpu.memory_space<vmem>>, vector<1x1x128xf32>
    %161 = vector.shape_cast %160 : vector<1x1x128xf32> to vector<1x128xf32>
    %162 = vector.shape_cast %161 : vector<1x128xf32> to vector<1x1x128xf32>
    %163 = vector.broadcast %162 : vector<1x1x128xf32> to vector<8x8x128xf32>
    %164 = arith.mulf %159, %163 : vector<8x8x128xf32>
    %165 = arith.addf %158, %164 : vector<8x8x128xf32>
    %c3_131 = arith.constant 3 : index
    %c4_132 = arith.constant 4 : index
    %c0_133 = arith.constant 0 : index
    %166 = vector.load %arg7[%c3_131, %c4_132, %c0_133] : memref<12x16x128xf32, #tpu.memory_space<vmem>>, vector<8x8x128xf32>
    %c19 = arith.constant 19 : index
    %c0_134 = arith.constant 0 : index
    %c0_135 = arith.constant 0 : index
    %167 = vector.load %arg5[%c19, %c0_134, %c0_135] : memref<25x1x128xf32, #tpu.memory_space<vmem>>, vector<1x1x128xf32>
    %168 = vector.shape_cast %167 : vector<1x1x128xf32> to vector<1x128xf32>
    %169 = vector.shape_cast %168 : vector<1x128xf32> to vector<1x1x128xf32>
    %170 = vector.broadcast %169 : vector<1x1x128xf32> to vector<8x8x128xf32>
    %171 = arith.mulf %166, %170 : vector<8x8x128xf32>
    %172 = arith.addf %165, %171 : vector<8x8x128xf32>
    %c4_136 = arith.constant 4 : index
    %c0_137 = arith.constant 0 : index
    %c0_138 = arith.constant 0 : index
    %173 = vector.load %arg7[%c4_136, %c0_137, %c0_138] : memref<12x16x128xf32, #tpu.memory_space<vmem>>, vector<8x8x128xf32>
    %c20 = arith.constant 20 : index
    %c0_139 = arith.constant 0 : index
    %c0_140 = arith.constant 0 : index
    %174 = vector.load %arg5[%c20, %c0_139, %c0_140] : memref<25x1x128xf32, #tpu.memory_space<vmem>>, vector<1x1x128xf32>
    %175 = vector.shape_cast %174 : vector<1x1x128xf32> to vector<1x128xf32>
    %176 = vector.shape_cast %175 : vector<1x128xf32> to vector<1x1x128xf32>
    %177 = vector.broadcast %176 : vector<1x1x128xf32> to vector<8x8x128xf32>
    %178 = arith.mulf %173, %177 : vector<8x8x128xf32>
    %179 = arith.addf %172, %178 : vector<8x8x128xf32>
    %c4_141 = arith.constant 4 : index
    %c1_142 = arith.constant 1 : index
    %c0_143 = arith.constant 0 : index
    %180 = vector.load %arg7[%c4_141, %c1_142, %c0_143] : memref<12x16x128xf32, #tpu.memory_space<vmem>>, vector<8x8x128xf32>
    %c21 = arith.constant 21 : index
    %c0_144 = arith.constant 0 : index
    %c0_145 = arith.constant 0 : index
    %181 = vector.load %arg5[%c21, %c0_144, %c0_145] : memref<25x1x128xf32, #tpu.memory_space<vmem>>, vector<1x1x128xf32>
    %182 = vector.shape_cast %181 : vector<1x1x128xf32> to vector<1x128xf32>
    %183 = vector.shape_cast %182 : vector<1x128xf32> to vector<1x1x128xf32>
    %184 = vector.broadcast %183 : vector<1x1x128xf32> to vector<8x8x128xf32>
    %185 = arith.mulf %180, %184 : vector<8x8x128xf32>
    %186 = arith.addf %179, %185 : vector<8x8x128xf32>
    %c4_146 = arith.constant 4 : index
    %c2_147 = arith.constant 2 : index
    %c0_148 = arith.constant 0 : index
    %187 = vector.load %arg7[%c4_146, %c2_147, %c0_148] : memref<12x16x128xf32, #tpu.memory_space<vmem>>, vector<8x8x128xf32>
    %c22 = arith.constant 22 : index
    %c0_149 = arith.constant 0 : index
    %c0_150 = arith.constant 0 : index
    %188 = vector.load %arg5[%c22, %c0_149, %c0_150] : memref<25x1x128xf32, #tpu.memory_space<vmem>>, vector<1x1x128xf32>
    %189 = vector.shape_cast %188 : vector<1x1x128xf32> to vector<1x128xf32>
    %190 = vector.shape_cast %189 : vector<1x128xf32> to vector<1x1x128xf32>
    %191 = vector.broadcast %190 : vector<1x1x128xf32> to vector<8x8x128xf32>
    %192 = arith.mulf %187, %191 : vector<8x8x128xf32>
    %193 = arith.addf %186, %192 : vector<8x8x128xf32>
    %c4_151 = arith.constant 4 : index
    %c3_152 = arith.constant 3 : index
    %c0_153 = arith.constant 0 : index
    %194 = vector.load %arg7[%c4_151, %c3_152, %c0_153] : memref<12x16x128xf32, #tpu.memory_space<vmem>>, vector<8x8x128xf32>
    %c23 = arith.constant 23 : index
    %c0_154 = arith.constant 0 : index
    %c0_155 = arith.constant 0 : index
    %195 = vector.load %arg5[%c23, %c0_154, %c0_155] : memref<25x1x128xf32, #tpu.memory_space<vmem>>, vector<1x1x128xf32>
    %196 = vector.shape_cast %195 : vector<1x1x128xf32> to vector<1x128xf32>
    %197 = vector.shape_cast %196 : vector<1x128xf32> to vector<1x1x128xf32>
    %198 = vector.broadcast %197 : vector<1x1x128xf32> to vector<8x8x128xf32>
    %199 = arith.mulf %194, %198 : vector<8x8x128xf32>
    %200 = arith.addf %193, %199 : vector<8x8x128xf32>
    %c4_156 = arith.constant 4 : index
    %c4_157 = arith.constant 4 : index
    %c0_158 = arith.constant 0 : index
    %201 = vector.load %arg7[%c4_156, %c4_157, %c0_158] : memref<12x16x128xf32, #tpu.memory_space<vmem>>, vector<8x8x128xf32>
    %c24 = arith.constant 24 : index
    %c0_159 = arith.constant 0 : index
    %c0_160 = arith.constant 0 : index
    %202 = vector.load %arg5[%c24, %c0_159, %c0_160] : memref<25x1x128xf32, #tpu.memory_space<vmem>>, vector<1x1x128xf32>
    %203 = vector.shape_cast %202 : vector<1x1x128xf32> to vector<1x128xf32>
    %204 = vector.shape_cast %203 : vector<1x128xf32> to vector<1x1x128xf32>
    %205 = vector.broadcast %204 : vector<1x1x128xf32> to vector<8x8x128xf32>
    %206 = arith.mulf %201, %205 : vector<8x8x128xf32>
    %207 = arith.addf %200, %206 : vector<8x8x128xf32>
    %208 = vector.shape_cast %207 : vector<8x8x128xf32> to vector<64x128xf32>
    %c2_161 = arith.constant 2 : index
    %c0_162 = arith.constant 0 : index
    %c0_163 = arith.constant 0 : index
    %209 = vector.load %arg4[%c2_161, %c0_162, %c0_163] : memref<5x1x128xf32, #tpu.memory_space<vmem>>, vector<1x1x128xf32>
    %210 = vector.shape_cast %209 : vector<1x1x128xf32> to vector<1x128xf32>
    %211 = vector.broadcast %210 : vector<1x128xf32> to vector<64x128xf32>
    %212 = arith.addf %208, %211 : vector<64x128xf32>
    %213 = arith.negf %212 : vector<64x128xf32>
    %214 = math.exp %213 : vector<64x128xf32>
    %cst_164 = arith.constant 1.000000e+00 : f32
    %215 = vector.broadcast %cst_164 : f32 to vector<64x128xf32>
    %216 = arith.addf %215, %214 : vector<64x128xf32>
    %217 = arith.divf %215, %216 : vector<64x128xf32>
    %218 = arith.mulf %212, %217 : vector<64x128xf32>
    %219 = arith.truncf %218 : vector<64x128xf32> to vector<64x128xbf16>
    %c0_165 = arith.constant 0 : index
    %c0_166 = arith.constant 0 : index
    %220 = vector.load %arg8[%c0_165, %c0_166] : memref<64x128xbf16, #tpu.memory_space<vmem>>, vector<64x128xbf16>
    tpu.vector_store %arg8[%c0_165, %c0_166], %219 {strides = array<i32>} : memref<64x128xbf16, #tpu.memory_space<vmem>>, vector<64x128xbf16>,
    %c0_167 = arith.constant 0 : index
    %c0_168 = arith.constant 0 : index
    %221 = vector.load %arg8[%c0_167, %c0_168] : memref<64x128xbf16, #tpu.memory_space<vmem>>, vector<64x128xbf16>
    %c1_169 = arith.constant 1 : index
    %c0_170 = arith.constant 0 : index
    %c0_171 = arith.constant 0 : index
    %222 = vector.load %arg3[%c1_169, %c0_170, %c0_171] : memref<3x128x128xbf16, #tpu.memory_space<vmem>>, vector<1x128x128xbf16>
    %223 = vector.shape_cast %222 : vector<1x128x128xbf16> to vector<128x128xbf16>
    %cst_172 = arith.constant dense<0.000000e+00> : vector<64x128xf32>
    %224 = tpu.matmul %221, %223, %cst_172 {dimension_numbers = #tpu.dot_dimension_numbers<[1], [0], [0], [1], [0, 0, 1, 1], [], []>} : vector<64x128xbf16>, vector<128x128xbf16>, vector<64x128xf32> -> vector<64x128xf32>
    %c3_173 = arith.constant 3 : index
    %c0_174 = arith.constant 0 : index
    %c0_175 = arith.constant 0 : index
    %225 = vector.load %arg4[%c3_173, %c0_174, %c0_175] : memref<5x1x128xf32, #tpu.memory_space<vmem>>, vector<1x1x128xf32>
    %226 = vector.shape_cast %225 : vector<1x1x128xf32> to vector<1x128xf32>
    %227 = vector.broadcast %226 : vector<1x128xf32> to vector<64x128xf32>
    %228 = arith.addf %224, %227 : vector<64x128xf32>
    %229 = arith.extf %18 : vector<64x128xbf16> to vector<64x128xf32>
    %230 = arith.addf %228, %229 : vector<64x128xf32>
    %231 = arith.truncf %230 : vector<64x128xf32> to vector<64x128xbf16>
    %c2_176 = arith.constant 2 : index
    %c0_177 = arith.constant 0 : index
    %c0_178 = arith.constant 0 : index
    %232 = vector.load %arg3[%c2_176, %c0_177, %c0_178] : memref<3x128x128xbf16, #tpu.memory_space<vmem>>, vector<1x128x128xbf16>
    %233 = vector.shape_cast %232 : vector<1x128x128xbf16> to vector<128x128xbf16>
    %cst_179 = arith.constant dense<0.000000e+00> : vector<64x128xf32>
    %234 = tpu.matmul %231, %233, %cst_179 {dimension_numbers = #tpu.dot_dimension_numbers<[1], [0], [0], [1], [0, 0, 1, 1], [], []>} : vector<64x128xbf16>, vector<128x128xbf16>, vector<64x128xf32> -> vector<64x128xf32>
    %c4_180 = arith.constant 4 : index
    %c0_181 = arith.constant 0 : index
    %c0_182 = arith.constant 0 : index
    %235 = vector.load %arg4[%c4_180, %c0_181, %c0_182] : memref<5x1x128xf32, #tpu.memory_space<vmem>>, vector<1x1x128xf32>
    %236 = vector.shape_cast %235 : vector<1x1x128xf32> to vector<1x128xf32>
    %237 = vector.broadcast %236 : vector<1x128xf32> to vector<64x128xf32>
    %238 = arith.addf %234, %237 : vector<64x128xf32>
    %cst_183 = arith.constant 0.000000e+00 : f32
    %239 = vector.broadcast %cst_183 : f32 to vector<64x128xf32>
    %240 = arith.maximumf %238, %239 : vector<64x128xf32>
    %cst_184 = arith.constant dense<0.000000e+00> : vector<128xf32>
    %241 = vector.multi_reduction <add>, %240, %cst_184 [0] : vector<64x128xf32> to vector<128xf32>
    %242 = vector.shape_cast %241 : vector<128xf32> to vector<1x128xf32>
    %cst_185 = arith.constant 6.400000e+01 : f32
    %243 = vector.broadcast %cst_185 : f32 to vector<1x128xf32>
    %244 = arith.divf %242, %243 : vector<1x128xf32>
    %245 = vector.shape_cast %244 : vector<1x128xf32> to vector<1x1x128xf32>
    %c0_186 = arith.constant 0 : index
    %c0_187 = arith.constant 0 : index
    %c0_188 = arith.constant 0 : index
    %246 = vector.load %arg6[%c0_186, %c0_187, %c0_188] : memref<1x1x128xf32, #tpu.memory_space<vmem>>, vector<1x1x128xf32>
    tpu.vector_store %arg6[%c0_186, %c0_187, %c0_188], %245 {strides = array<i32>} : memref<1x1x128xf32, #tpu.memory_space<vmem>>, vector<1x1x128xf32>,
    return
  }
  func.func @transform_0(%arg0: i32) -> (i32, i32, i32) {
    %c0_i32 = arith.constant 0 : i32
    %c0_i32_0 = arith.constant 0 : i32
    %c0_i32_1 = arith.constant 0 : i32
    return %arg0, %c0_i32, %c0_i32_0 : i32, i32, i32
  }
  func.func @transform_1(%arg0: i32) -> (i32, i32) {
    %c0_i32 = arith.constant 0 : i32
    %c0_i32_0 = arith.constant 0 : i32
    %c0_i32_1 = arith.constant 0 : i32
    return %c0_i32, %c0_i32_0 : i32, i32
  }
  func.func @transform_2(%arg0: i32) -> (i32, i32, i32) {
    %c0_i32 = arith.constant 0 : i32
    %c0_i32_0 = arith.constant 0 : i32
    %c0_i32_1 = arith.constant 0 : i32
    %c0_i32_2 = arith.constant 0 : i32
    return %c0_i32, %c0_i32_0, %c0_i32_1 : i32, i32, i32
  }
  func.func @transform_3(%arg0: i32) -> (i32, i32, i32) {
    %c0_i32 = arith.constant 0 : i32
    %c0_i32_0 = arith.constant 0 : i32
    %c0_i32_1 = arith.constant 0 : i32
    %c0_i32_2 = arith.constant 0 : i32
    return %c0_i32, %c0_i32_0, %c0_i32_1 : i32, i32, i32
  }
  func.func @transform_4(%arg0: i32) -> (i32, i32, i32) {
    %c0_i32 = arith.constant 0 : i32
    %c0_i32_0 = arith.constant 0 : i32
    %c0_i32_1 = arith.constant 0 : i32
    %c0_i32_2 = arith.constant 0 : i32
    return %c0_i32, %c0_i32_0, %c0_i32_1 : i32, i32, i32
  }
  func.func @transform_5(%arg0: i32) -> (i32, i32, i32) {
    %c0_i32 = arith.constant 0 : i32
    %c0_i32_0 = arith.constant 0 : i32
    %c0_i32_1 = arith.constant 0 : i32
    return %arg0, %c0_i32, %c0_i32_0 : i32, i32, i32
  }
}

</mosaic_0001>

<llo_original>
// kernel: mixnet_forward.3
$region0: #{mixnet_forward.3}
  #allocation0 [shape = 'u32[]', space=smem, size = 0x4, offset = 0x4, fixed_abs, tag = 'smem constant byte address 0x4 - core index']
  #allocation1 [shape = 'u32[144,128]{1,0:T(1,128)}', space=vmem, size = 0x12000, scoped, tag = 'internal scratch']
  %s0 = inlined_call_operand.vmem [shape: f32[2,1,128], index: 0, kind: input, shape index: {}]
  %s1 = inlined_call_operand.vmem [shape: bf16[2,128,128], index: 1, kind: input, shape index: {}]
  %s2 = inlined_call_operand.vmem [shape: f32[2,1,128], index: 2, kind: input, shape index: {}]
  %s3 = inlined_call_operand.hbm [shape: f32[2,1,128], index: 3, kind: output, shape index: {}]
  %s4 = sld [smem:[#allocation0]]
  $region22: #{mixnet_forward.3} parent=0
    _
  %s6 = ssub.s32 1, %s4
  %s7 = scalar_select 0, %s6, %s4
  $region1: #{mixnet_forward.3} parent=0
    #allocation2 [shape = 'u8[1024]{0}', space=vmem, size = 0x400, scoped, tag = 'output window, operand 0, single buffered']
    #allocation3 [shape = 's32[1]{0}', space=sflag, size = 0x4, scoped, tag = 'scoped memory for mixnet_forward.3']
    %8 = vsyncpa [#allocation3], 0
    // Predicated region
    $region2: #{mixnet_forward.3} parent=1 // pred_check
      _
    $region3: #{mixnet_forward.3} parent=1 // pred_check_branch
      %10 = sbr.rel (0) target = $region5
    $region4: #{mixnet_forward.3} parent=1 // pred_region
      _
    $region5: #{mixnet_forward.3} parent=1 // pred_fallthru
      _
    // Predicated region
    $region6: #{mixnet_forward.3} parent=1 // pred_check
      _
    $region7: #{mixnet_forward.3} parent=1 // pred_check_branch
      %12 = sbr.rel (0) target = $region9
    $region8: #{mixnet_forward.3} parent=1 // pred_region
      _
    $region9: #{mixnet_forward.3} parent=1 // pred_fallthru
      _
    // Predicated region
    $region10: #{mixnet_forward.3} parent=1 // pred_check
      _
    $region11: #{mixnet_forward.3} parent=1 // pred_check_branch
      %14 = sbr.rel (0) target = $region13
    $region12: #{mixnet_forward.3} parent=1 // pred_region
      _
    $region13: #{mixnet_forward.3} parent=1 // pred_fallthru
      _
    %v16 = vld [vmem:[%s0] sm:$0x1]
    %v17 = vld [vmem:[%s0 + $0x1] sm:$0x1]
    %v18 = vpack.c.bf16 %v16, %v16
    %v19 = vpack.c.bf16 %v17, %v17
    %v20 = vld [vmem:[%s1] sm:$0xf]
    %v21 = vld [vmem:[%s1 + $0x4] sm:$0xf]
    %v22 = vld [vmem:[%s1 + $0x8] sm:$0xf]
    %v23 = vld [vmem:[%s1 + $0xc] sm:$0xf]
    %v24 = vld [vmem:[%s1 + $0x10] sm:$0xf]
    %v25 = vld [vmem:[%s1 + $0x14] sm:$0xf]
    %v26 = vld [vmem:[%s1 + $0x18] sm:$0xf]
    %v27 = vld [vmem:[%s1 + $0x1c] sm:$0xf]
    %v28 = vld [vmem:[%s1 + $0x20] sm:$0xf]
    %v29 = vld [vmem:[%s1 + $0x24] sm:$0xf]
    %v30 = vld [vmem:[%s1 + $0x28] sm:$0xf]
    %v31 = vld [vmem:[%s1 + $0x2c] sm:$0xf]
    %v32 = vld [vmem:[%s1 + $0x30] sm:$0xf]
    %v33 = vld [vmem:[%s1 + $0x34] sm:$0xf]
    %v34 = vld [vmem:[%s1 + $0x38] sm:$0xf]
    %v35 = vld [vmem:[%s1 + $0x3c] sm:$0xf]
    %v36 = vld [vmem:[%s2] sm:$0x1]
    %v38 = vlaneseq
    %v39 = vshrl.u32 %v38, 7
    %v40 = vsub.s32 0, %v39
    %v41 = vrot.slane %v36, %v40
    %v45 = vunpack.c.l.b16 %v18
    %v46 = vunpack.c.l.b16 %v19
    %v47 = vrot.slane %v46, 7
    %vm48 = vcmask 1041409
    %v49 = vsel %vm48, %v47, %v45
    %v50 = vpack.c.b16 %v49, %v49
    %v68 = vunpack.c.l.b16 %v20
    %v69 = vunpack.c.l.b16 %v21
    %v70 = vunpack.c.l.b16 %v22
    %v71 = vunpack.c.l.b16 %v23
    %v72 = vunpack.c.l.b16 %v24
    %v73 = vunpack.c.l.b16 %v25
    %v74 = vunpack.c.l.b16 %v26
    %v75 = vunpack.c.l.b16 %v27
    %v76 = vunpack.c.l.b16 %v28
    %v77 = vunpack.c.l.b16 %v29
    %v78 = vunpack.c.l.b16 %v30
    %v79 = vunpack.c.l.b16 %v31
    %v80 = vunpack.c.l.b16 %v32
    %v81 = vunpack.c.l.b16 %v33
    %v82 = vunpack.c.l.b16 %v34
    %v83 = vunpack.c.l.b16 %v35
    %v84 = vpack.c.b16 %v69, %v68
    %v85 = vpack.c.b16 %v71, %v70
    %v86 = vpack.c.b16 %v73, %v72
    %v87 = vpack.c.b16 %v75, %v74
    %v88 = vpack.c.b16 %v77, %v76
    %v89 = vpack.c.b16 %v79, %v78
    %v90 = vpack.c.b16 %v81, %v80
    %v91 = vpack.c.b16 %v83, %v82
    %100 = vmatprep.subr.bf16.mxu0 0
    %101 = vmatpush1.bf16.msra.mxu0 %v84
    %102 = vmatprep.subr.bf16.mxu0 0
    %103 = vmatpush1.bf16.msra.mxu0 %v85
    %104 = vmatprep.subr.bf16.mxu0 0
    %105 = vmatpush1.bf16.msra.mxu0 %v86
    %106 = vmatprep.subr.bf16.mxu0 0
    %107 = vmatpush1.bf16.msra.mxu0 %v87
    %108 = vmatprep.subr.bf16.mxu0 0
    %109 = vmatpush1.bf16.msra.mxu0 %v88
    %110 = vmatprep.subr.bf16.mxu0 0
    %111 = vmatpush1.bf16.msra.mxu0 %v89
    %112 = vmatprep.subr.bf16.mxu0 0
    %113 = vmatpush1.bf16.msra.mxu0 %v90
    %114 = vmatprep.subr.bf16.mxu0 0
    %115 = vmatpush1.bf16.msra.mxu0 %v91
    %116 = vmatprep.subr.bf16.mxu0 0
    %117 = vmatpush1.bf16.msra.mxu0 0
    %118 = vmatprep.subr.bf16.mxu0 0
    %119 = vmatpush1.bf16.msra.mxu0 0
    %120 = vmatprep.subr.bf16.mxu0 0
    %121 = vmatpush1.bf16.msra.mxu0 0
    %122 = vmatprep.subr.bf16.mxu0 0
    %123 = vmatpush1.bf16.msra.mxu0 0
    %124 = vmatprep.subr.bf16.mxu0 0
    %125 = vmatpush1.bf16.msra.mxu0 0
    %126 = vmatprep.subr.bf16.mxu0 0
    %127 = vmatpush1.bf16.msra.mxu0 0
    %128 = vmatprep.subr.bf16.mxu0 0
    %129 = vmatpush1.bf16.msra.mxu0 0
    %130 = vmatprep.subr.bf16.mxu0 0
    %131 = vmatpush1.bf16.msra.mxu0 0
    %132 = vmatprep.mubr.bf16.mxu0 0
    %133 = vmatmul.mubr.bf16.gmra.mrb[0].mxu0 %v50
    %v134 = vpop.f32.mrb[0].mxu0
    %v135 = vadd.f32 %v41, %v134
    %v136 = vpop.f32.mrb[0].mxu0
    %v137 = vpop.f32.mrb[0].mxu0
    %v138 = vpop.f32.mrb[0].mxu0
    %139 = vdwg.mxu0
    %v140 = vpack.c.bf16 %v135, %v135
    %s141 = scalar_lea.vmem %s1, 64
    %v142 = vld [vmem:[%s141] sm:$0xf]
    %v143 = vld [vmem:[%s141 + $0x4] sm:$0xf]
    %v144 = vld [vmem:[%s141 + $0x8] sm:$0xf]
    %v145 = vld [vmem:[%s141 + $0xc] sm:$0xf]
    %v146 = vld [vmem:[%s141 + $0x10] sm:$0xf]
    %v147 = vld [vmem:[%s141 + $0x14] sm:$0xf]
    %v148 = vld [vmem:[%s141 + $0x18] sm:$0xf]
    %v149 = vld [vmem:[%s141 + $0x1c] sm:$0xf]
    %v150 = vld [vmem:[%s141 + $0x20] sm:$0xf]
    %v151 = vld [vmem:[%s141 + $0x24] sm:$0xf]
    %v152 = vld [vmem:[%s141 + $0x28] sm:$0xf]
    %v153 = vld [vmem:[%s141 + $0x2c] sm:$0xf]
    %v154 = vld [vmem:[%s141 + $0x30] sm:$0xf]
    %v155 = vld [vmem:[%s141 + $0x34] sm:$0xf]
    %v156 = vld [vmem:[%s141 + $0x38] sm:$0xf]
    %v157 = vld [vmem:[%s141 + $0x3c] sm:$0xf]
    %s158 = scalar_lea.vmem %s2, 1
    %v159 = vld [vmem:[%s158] sm:$0x1]
    %v161 = vlaneseq
    %v162 = vshrl.u32 %v161, 7
    %v163 = vsub.s32 0, %v162
    %v164 = vrot.slane %v159, %v163
    %v182 = vunpack.c.l.b16 %v142
    %v183 = vunpack.c.l.b16 %v143
    %v184 = vunpack.c.l.b16 %v144
    %v185 = vunpack.c.l.b16 %v145
    %v186 = vunpack.c.l.b16 %v146
    %v187 = vunpack.c.l.b16 %v147
    %v188 = vunpack.c.l.b16 %v148
    %v189 = vunpack.c.l.b16 %v149
    %v190 = vunpack.c.l.b16 %v150
    %v191 = vunpack.c.l.b16 %v151
    %v192 = vunpack.c.l.b16 %v152
    %v193 = vunpack.c.l.b16 %v153
    %v194 = vunpack.c.l.b16 %v154
    %v195 = vunpack.c.l.b16 %v155
    %v196 = vunpack.c.l.b16 %v156
    %v197 = vunpack.c.l.b16 %v157
    %v198 = vpack.c.b16 %v183, %v182
    %v199 = vpack.c.b16 %v185, %v184
    %v200 = vpack.c.b16 %v187, %v186
    %v201 = vpack.c.b16 %v189, %v188
    %v202 = vpack.c.b16 %v191, %v190
    %v203 = vpack.c.b16 %v193, %v192
    %v204 = vpack.c.b16 %v195, %v194
    %v205 = vpack.c.b16 %v197, %v196
    %214 = vmatprep.subr.bf16.mxu0 0
    %215 = vmatpush1.bf16.msra.mxu0 %v198
    %216 = vmatprep.subr.bf16.mxu0 0
    %217 = vmatpush1.bf16.msra.mxu0 %v199
    %218 = vmatprep.subr.bf16.mxu0 0
    %219 = vmatpush1.bf16.msra.mxu0 %v200
    %220 = vmatprep.subr.bf16.mxu0 0
    %221 = vmatpush1.bf16.msra.mxu0 %v201
    %222 = vmatprep.subr.bf16.mxu0 0
    %223 = vmatpush1.bf16.msra.mxu0 %v202
    %224 = vmatprep.subr.bf16.mxu0 0
    %225 = vmatpush1.bf16.msra.mxu0 %v203
    %226 = vmatprep.subr.bf16.mxu0 0
    %227 = vmatpush1.bf16.msra.mxu0 %v204
    %228 = vmatprep.subr.bf16.mxu0 0
    %229 = vmatpush1.bf16.msra.mxu0 %v205
    %230 = vmatprep.subr.bf16.mxu0 0
    %231 = vmatpush1.bf16.msra.mxu0 0
    %232 = vmatprep.subr.bf16.mxu0 0
    %233 = vmatpush1.bf16.msra.mxu0 0
    %234 = vmatprep.subr.bf16.mxu0 0
    %235 = vmatpush1.bf16.msra.mxu0 0
    %236 = vmatprep.subr.bf16.mxu0 0
    %237 = vmatpush1.bf16.msra.mxu0 0
    %238 = vmatprep.subr.bf16.mxu0 0
    %239 = vmatpush1.bf16.msra.mxu0 0
    %240 = vmatprep.subr.bf16.mxu0 0
    %241 = vmatpush1.bf16.msra.mxu0 0
    %242 = vmatprep.subr.bf16.mxu0 0
    %243 = vmatpush1.bf16.msra.mxu0 0
    %244 = vmatprep.subr.bf16.mxu0 0
    %245 = vmatpush1.bf16.msra.mxu0 0
    %246 = vmatprep.mubr.bf16.mxu0 0
    %247 = vmatmul.mubr.bf16.gmra.mrb[0].mxu0 %v140
    %v248 = vpop.f32.mrb[0].mxu0
    %v249 = vadd.f32 %v164, %v248
    %v250 = vpop.f32.mrb[0].mxu0
    %v251 = vpop.f32.mrb[0].mxu0
    %v252 = vpop.f32.mrb[0].mxu0
    %253 = vdwg.mxu0
    %v256 = vunpack.c.l.s4 1966171168
    %v257 = vunpack.c.0.s8 %v256
    %v258 = vlaneseq
    %v259 = vshrl.u32 %v258, 7
    %v260 = vsub.s32 %v257, %v259
    %v261 = vrot.slane %v249, %v260
    %v262 = vcombine.high %v261, %v261
    %v264 = vunpack.c.l.s4 1966171168
    %v265 = vunpack.c.0.s8 %v264
    %v266 = vlaneseq
    %v267 = vshrl.u32 %v266, 7
    %v268 = vsub.s32 %v265, %v267
    %v269 = vrot.slane %v261, %v268
    %v271 = vunpack.c.l.s4 1966171168
    %v272 = vunpack.c.0.s8 %v271
    %v273 = vlaneseq
    %v274 = vshrl.u32 %v273, 7
    %v275 = vsub.s32 %v272, %v274
    %v276 = vrot.slane %v262, %v275
    %279 = vst [vmem:[#allocation2] sm:$0x1] %v269
    %280 = vst [vmem:[#allocation2 + $0x1] sm:$0x1] %v276
    // Predicated region
    $region14: #{mixnet_forward.3} parent=1 // pred_check
      _
    $region15: #{mixnet_forward.3} parent=1 // pred_check_branch
      %282 = sbr.rel (0) target = $region17
    $region16: #{mixnet_forward.3} parent=1 // pred_region
      %s284 = ssub.s32 32, 32
      %285 = vsyncadd [#allocation3], %s284
      %s286 = sshll.u32 [#allocation2], 4
      %s287 = int_to_ptr.vmem [resolvable:$true] %s286
      %292 = dma.vmem_to_hbm [thread:$0]  %s287, 32, %s3, [#allocation3], 16, 16, 1
    $region17: #{mixnet_forward.3} parent=1 // pred_fallthru
      _
    // Predicated region
    $region18: #{mixnet_forward.3} parent=1 // pred_check
      _
    $region19: #{mixnet_forward.3} parent=1 // pred_check_branch
      %294 = sbr.rel (0) target = $region21
    $region20: #{mixnet_forward.3} parent=1 // pred_region
      %295 = dma.done [#allocation3], 32
    $region21: #{mixnet_forward.3} parent=1 // pred_fallthru
      _
    %296 = vsyncpa [#allocation3], 1

// kernel: mixnet_forward.2
$region0: #{mixnet_forward.2}
  #allocation0 [shape = 'u32[]', space=smem, size = 0x4, offset = 0x4, fixed_abs, tag = 'smem constant byte address 0x4 - core index']
  #allocation1 [shape = 'u32[144,128]{1,0:T(1,128)}', space=vmem, size = 0x12000, scoped, tag = 'internal scratch']
  #allocation2 [shape = 'f32[12,16,128]{2,1,0:T(8,128)}', space=vmem, size = 0x18000, scoped, tag = 'scratch operand']
  #allocation3 [shape = 'bf16[64,128]{1,0:T(16,128)(2,1)}', space=vmem, size = 0x4000, scoped, tag = 'scratch operand']
  %s0 = inlined_call_operand.vmem [shape: bf16[2,64,32], index: 0, kind: input, shape index: {}]
  %s1 = inlined_call_operand.vmem [shape: bf16[32,128], index: 1, kind: input, shape index: {}]
  %s2 = inlined_call_operand.vmem [shape: bf16[3,128,128], index: 2, kind: input, shape index: {}]
  %s3 = inlined_call_operand.vmem [shape: f32[5,1,128], index: 3, kind: input, shape index: {}]
  %s4 = inlined_call_operand.vmem [shape: f32[25,1,128], index: 4, kind: input, shape index: {}]
  %s5 = inlined_call_operand.vmem [shape: f32[2,1,128], index: 5, kind: output, shape index: {}]
  %s6 = sld [smem:[#allocation0]]
  $region53: #{mixnet_forward.2} parent=0
    _
  %s8 = ssub.s32 1, %s6
  %s9 = scalar_select 0, %s8, %s6
  loop: start=0, step=1, limit=4
  $region2: #{mixnet_forward.2} parent=0 // loop_pre_header
    _
  $region3: #{mixnet_forward.2} parent=0 // loop_header
    %s11 = sphi 0, %s15
    %p12 = scmp.ge.s32.totalorder %s11, 4
    %s21 = sphi 0, %s23
    %s24 = sphi 0, %s21
    %s25 = sphi 0, %s24
    %s41 = sphi 0, %s25
    %s45 = sphi 0, %s45
    %s47 = sphi 0, %s45
    %s48 = sphi 0, %s47
    %s62 = sphi 0, %s48
    %s66 = sphi 0, %s66
    %s68 = sphi 0, %s66
    %s69 = sphi 0, %s68
    %s83 = sphi 0, %s69
    %s87 = sphi 0, %s87
    %s89 = sphi 0, %s87
    %s90 = sphi 0, %s89
    %s104 = sphi 0, %s90
    %s108 = sphi 0, %s108
    %s110 = sphi 0, %s108
    %s111 = sphi 0, %s110
    %s125 = sphi 0, %s111
    %s131 = sphi 0, %s133
    %s134 = sphi 0, %s131
    %s135 = sphi 0, %s134
    %s151 = sphi 0, %s135
  $region4: #{mixnet_forward.2} parent=0 // loop_header_branch
    %14 = sbr.rel (%p12) target = $region8
  $region5: #{mixnet_forward.2} parent=0 // loop_body
    %s16 = ssub.s32 %s11, 1
    %s17 = ssub.s32 %s11, 2
    %s18 = sadd.s32 %s11, 1
    %s19 = ssub.s32 %s11, %s18
    %p20 = scmp.eq.s32.totalorder %s19, 0
    %s22 = sadd.s32 %s21, 1
    %s23 = scalar_select %p20, %s21, %s22
    %p26 = pneg %p20
    %p27 = scmp.eq.s32.totalorder %s11, 1
    %p28 = por %p26, %p27
    %p29 = scmp.ne.s32.totalorder %s21, %s24
    %p30 = scmp.eq.s32.totalorder %s11, 0
    %p31 = por %p29, %p30
    %p32 = scmp.ne.s32.totalorder %s21, %s24
    %p33 = scmp.eq.s32.totalorder %s16, 1
    %p34 = por %p32, %p33
    %p35 = scmp.ne.s32.totalorder %s24, %s25
    %p36 = scmp.eq.s32.totalorder %s16, 0
    %p37 = por %p35, %p36
    %p38 = scmp.ne.s32.totalorder %s24, %s25
    %p39 = scmp.eq.s32.totalorder %s17, 1
    %p40 = por %p38, %p39
    %p42 = scmp.ne.s32.totalorder %s25, %s41
    %p43 = scmp.eq.s32.totalorder %s17, 0
    %p44 = por %p42, %p43
    %s46 = sadd.s32 %s45, 1
    %p49 = scmp.eq.s32.totalorder %s11, 1
    %p50 = scmp.ne.s32.totalorder %s45, %s47
    %p51 = scmp.eq.s32.totalorder %s11, 0
    %p52 = por %p50, %p51
    %p53 = scmp.ne.s32.totalorder %s45, %s47
    %p54 = scmp.eq.s32.totalorder %s16, 1
    %p55 = por %p53, %p54
    %p56 = scmp.ne.s32.totalorder %s47, %s48
    %p57 = scmp.eq.s32.totalorder %s16, 0
    %p58 = por %p56, %p57
    %p59 = scmp.ne.s32.totalorder %s47, %s48
    %p60 = scmp.eq.s32.totalorder %s17, 1
    %p61 = por %p59, %p60
    %p63 = scmp.ne.s32.totalorder %s48, %s62
    %p64 = scmp.eq.s32.totalorder %s17, 0
    %p65 = por %p63, %p64
    %s67 = sadd.s32 %s66, 1
    %p70 = scmp.eq.s32.totalorder %s11, 1
    %p71 = scmp.ne.s32.totalorder %s66, %s68
    %p72 = scmp.eq.s32.totalorder %s11, 0
    %p73 = por %p71, %p72
    %p74 = scmp.ne.s32.totalorder %s66, %s68
    %p75 = scmp.eq.s32.totalorder %s16, 1
    %p76 = por %p74, %p75
    %p77 = scmp.ne.s32.totalorder %s68, %s69
    %p78 = scmp.eq.s32.totalorder %s16, 0
    %p79 = por %p77, %p78
    %p80 = scmp.ne.s32.totalorder %s68, %s69
    %p81 = scmp.eq.s32.totalorder %s17, 1
    %p82 = por %p80, %p81
    %p84 = scmp.ne.s32.totalorder %s69, %s83
    %p85 = scmp.eq.s32.totalorder %s17, 0
    %p86 = por %p84, %p85
    %s88 = sadd.s32 %s87, 1
    %p91 = scmp.eq.s32.totalorder %s11, 1
    %p92 = scmp.ne.s32.totalorder %s87, %s89
    %p93 = scmp.eq.s32.totalorder %s11, 0
    %p94 = por %p92, %p93
    %p95 = scmp.ne.s32.totalorder %s87, %s89
    %p96 = scmp.eq.s32.totalorder %s16, 1
    %p97 = por %p95, %p96
    %p98 = scmp.ne.s32.totalorder %s89, %s90
    %p99 = scmp.eq.s32.totalorder %s16, 0
    %p100 = por %p98, %p99
    %p101 = scmp.ne.s32.totalorder %s89, %s90
    %p102 = scmp.eq.s32.totalorder %s17, 1
    %p103 = por %p101, %p102
    %p105 = scmp.ne.s32.totalorder %s90, %s104
    %p106 = scmp.eq.s32.totalorder %s17, 0
    %p107 = por %p105, %p106
    %s109 = sadd.s32 %s108, 1
    %p112 = scmp.eq.s32.totalorder %s11, 1
    %p113 = scmp.ne.s32.totalorder %s108, %s110
    %p114 = scmp.eq.s32.totalorder %s11, 0
    %p115 = por %p113, %p114
    %p116 = scmp.ne.s32.totalorder %s108, %s110
    %p117 = scmp.eq.s32.totalorder %s16, 1
    %p118 = por %p116, %p117
    %p119 = scmp.ne.s32.totalorder %s110, %s111
    %p120 = scmp.eq.s32.totalorder %s16, 0
    %p121 = por %p119, %p120
    %p122 = scmp.ne.s32.totalorder %s110, %s111
    %p123 = scmp.eq.s32.totalorder %s17, 1
    %p124 = por %p122, %p123
    %p126 = scmp.ne.s32.totalorder %s111, %s125
    %p127 = scmp.eq.s32.totalorder %s17, 0
    %p128 = por %p126, %p127
    %s129 = ssub.s32 %s11, %s18
    %p130 = scmp.eq.s32.totalorder %s129, 0
    %s132 = sadd.s32 %s131, 1
    %s133 = scalar_select %p130, %s131, %s132
    %p136 = pneg %p130
    %p137 = scmp.eq.s32.totalorder %s11, 1
    %p138 = por %p136, %p137
    %p139 = scmp.ne.s32.totalorder %s131, %s134
    %p140 = scmp.eq.s32.totalorder %s11, 0
    %p141 = por %p139, %p140
    %p142 = scmp.ne.s32.totalorder %s131, %s134
    %p143 = scmp.eq.s32.totalorder %s16, 1
    %p144 = por %p142, %p143
    %p145 = scmp.ne.s32.totalorder %s134, %s135
    %p146 = scmp.eq.s32.totalorder %s16, 0
    %p147 = por %p145, %p146
    %p148 = scmp.ne.s32.totalorder %s134, %s135
    %p149 = scmp.eq.s32.totalorder %s17, 1
    %p150 = por %p148, %p149
    %p152 = scmp.ne.s32.totalorder %s135, %s151
    %p153 = scmp.eq.s32.totalorder %s17, 0
    %p154 = por %p152, %p153
    %p155 = scmp.le.s32.totalorder 1, %s11
    %p156 = scmp.lt.s32.totalorder %s11, 3
    %p157 = pnand %p155, %p156
    %p158 = pneg %p157
    // Predicated region
    $region9: #{mixnet_forward.2} parent=5 // pred_check
      _
    $region10: #{mixnet_forward.2} parent=5 // pred_check_branch
      %160 = sbr.rel (%p157) target = $region12
    $region11: #{mixnet_forward.2} parent=5 // pred_region
      %s161 = ssub.s32 %s11, 1
      // Predicated region
      $region13: #{mixnet_forward.2} parent=11 // pred_check
        %p162 = pneg %p58
      $region14: #{mixnet_forward.2} parent=11 // pred_check_branch
        %164 = sbr.rel (%p162) target = $region16
      $region15: #{mixnet_forward.2} parent=11 // pred_region
        _
      $region16: #{mixnet_forward.2} parent=11 // pred_fallthru
        _
      // Predicated region
      $region17: #{mixnet_forward.2} parent=11 // pred_check
        %p165 = pneg %p79
      $region18: #{mixnet_forward.2} parent=11 // pred_check_branch
        %167 = sbr.rel (%p165) target = $region20
      $region19: #{mixnet_forward.2} parent=11 // pred_region
        _
      $region20: #{mixnet_forward.2} parent=11 // pred_fallthru
        _
      // Predicated region
      $region21: #{mixnet_forward.2} parent=11 // pred_check
        %p168 = pneg %p100
      $region22: #{mixnet_forward.2} parent=11 // pred_check_branch
        %170 = sbr.rel (%p168) target = $region24
      $region23: #{mixnet_forward.2} parent=11 // pred_region
        _
      $region24: #{mixnet_forward.2} parent=11 // pred_fallthru
        _
      // Predicated region
      $region25: #{mixnet_forward.2} parent=11 // pred_check
        %p171 = pneg %p121
      $region26: #{mixnet_forward.2} parent=11 // pred_check_branch
        %173 = sbr.rel (%p171) target = $region28
      $region27: #{mixnet_forward.2} parent=11 // pred_region
        _
      $region28: #{mixnet_forward.2} parent=11 // pred_fallthru
        _
    $region12: #{mixnet_forward.2} parent=5 // pred_fallthru
      _
    %p174 = scmp.lt.s32.totalorder %s11, 2
    // Predicated region
    $region29: #{mixnet_forward.2} parent=5 // pred_check
      %p175 = pneg %p174
    $region30: #{mixnet_forward.2} parent=5 // pred_check_branch
      %177 = sbr.rel (%p175) target = $region32
    $region31: #{mixnet_forward.2} parent=5 // pred_region
      // Predicated region
      $region33: #{mixnet_forward.2} parent=31 // pred_check
        %p178 = pneg %p31
      $region34: #{mixnet_forward.2} parent=31 // pred_check_branch
        %180 = sbr.rel (%p178) target = $region36
      $region35: #{mixnet_forward.2} parent=31 // pred_region
        %p181 = scmp.lt.s32.totalorder %s11, 1
        %s182 = scalar_select %p181, %s11, 1
        %s183 = smul.addr %s182, 8
        %s184 = smul.addr %s183, 4
        %s185 = scalar_lea.vmem %s0, %s184
      $region36: #{mixnet_forward.2} parent=31 // pred_fallthru
        _
    $region32: #{mixnet_forward.2} parent=5 // pred_fallthru
      _
    %p186 = scmp.le.s32.totalorder 1, %s11
    %p187 = scmp.lt.s32.totalorder %s11, 3
    %p188 = pnand %p186, %p187
    %p189 = pneg %p188
    // Predicated region
    $region37: #{mixnet_forward.2} parent=5 // pred_check
      _
    $region38: #{mixnet_forward.2} parent=5 // pred_check_branch
      %191 = sbr.rel (%p188) target = $region40
    $region39: #{mixnet_forward.2} parent=5 // pred_region
      %s192 = ssub.s32 %s11, 1
      %p193 = scmp.lt.s32.totalorder %s16, 1
      %s194 = scalar_select %p193, %s16, 1
      %s195 = smul.addr %s194, 8
      %s196 = smul.addr %s195, 4
      %s197 = scalar_lea.vmem %s0, %s196
      %p198 = pneg %p37
      %p199 = pneg %p34
      %p200 = pneg %p58
      %p201 = pneg %p55
      %p202 = pneg %p79
      %p203 = pneg %p76
      %p204 = pneg %p100
      %p205 = pneg %p97
      %p206 = pneg %p121
      %p207 = pneg %p118
      %p208 = pneg %p147
      %p209 = pneg %p144
      %p210 = scmp.lt.s32.totalorder %s16, 1
      %s211 = scalar_select %p210, %s16, 1
      %s212 = scalar_lea.vmem %s5, %s211
      %p213 = scmp.lt.s32.totalorder %s16, 1
      %s214 = scalar_select %p213, %s16, 1
      %s215 = smul.addr %s214, 8
      %s216 = smul.addr %s215, 4
      %s217 = scalar_lea.vmem %s0, %s216
      %p218 = scmp.lt.s32.totalorder %s16, 1
      %s219 = scalar_select %p218, %s16, 1
      %s220 = scalar_lea.vmem %s5, %s219
      %222 = vst [vmem:[#allocation2] sm:$0xff] 0.0
      %223 = vst [vmem:[#allocation2 + $0x8] sm:$0xff] 0.0
      %224 = vst [vmem:[#allocation2 + $0x10] sm:$0xff] 0.0
      %225 = vst [vmem:[#allocation2 + $0x18] sm:$0xff] 0.0
      %s226 = scalar_lea.vmem [#allocation2], 160
      %227 = vst [vmem:[%s226] sm:$0xff] 0.0
      %228 = vst [vmem:[%s226 + $0x8] sm:$0xff] 0.0
      %229 = vst [vmem:[%s226 + $0x10] sm:$0xff] 0.0
      %230 = vst [vmem:[%s226 + $0x18] sm:$0xff] 0.0
      %s231 = scalar_lea.vmem [#allocation2], 32
      %232 = vst [vmem:[%s231] sm:$0x3] 0.0
      %233 = vst [vmem:[%s231 + $0x10] sm:$0x3] 0.0
      %234 = vst [vmem:[%s231 + $0x20] sm:$0x3] 0.0
      %235 = vst [vmem:[%s231 + $0x30] sm:$0x3] 0.0
      %236 = vst [vmem:[%s231 + $0x40] sm:$0x3] 0.0
      %237 = vst [vmem:[%s231 + $0x50] sm:$0x3] 0.0
      %238 = vst [vmem:[%s231 + $0x60] sm:$0x3] 0.0
      %239 = vst [vmem:[%s231 + $0x70] sm:$0x3] 0.0
      %240 = vst [vmem:[%s231 + $0xa] sm:$0x3f] 0.0
      %241 = vst [vmem:[%s231 + $0x1a] sm:$0x3f] 0.0
      %242 = vst [vmem:[%s231 + $0x2a] sm:$0x3f] 0.0
      %243 = vst [vmem:[%s231 + $0x3a] sm:$0x3f] 0.0
      %244 = vst [vmem:[%s231 + $0x4a] sm:$0x3f] 0.0
      %245 = vst [vmem:[%s231 + $0x5a] sm:$0x3f] 0.0
      %246 = vst [vmem:[%s231 + $0x6a] sm:$0x3f] 0.0
      %247 = vst [vmem:[%s231 + $0x7a] sm:$0x3f] 0.0
      %v248 = vld [vmem:[%s217] sm:$0xf]
      %v249 = vld [vmem:[%s217 + $0x4] sm:$0xf]
      %v250 = vld [vmem:[%s217 + $0x8] sm:$0xf]
      %v251 = vld [vmem:[%s217 + $0xc] sm:$0xf]
      %v252 = vld [vmem:[%s217 + $0x10] sm:$0xf]
      %v253 = vld [vmem:[%s217 + $0x14] sm:$0xf]
      %v254 = vld [vmem:[%s217 + $0x18] sm:$0xf]
      %v255 = vld [vmem:[%s217 + $0x1c] sm:$0xf]
      %v256 = vld [vmem:[%s1] sm:$0xf]
      %v257 = vld [vmem:[%s1 + $0x4] sm:$0xf]
      %v258 = vld [vmem:[%s1 + $0x8] sm:$0xf]
      %v259 = vld [vmem:[%s1 + $0xc] sm:$0xf]
      %v260 = vld [vmem:[%s3] sm:$0x1]
      %v262 = vlaneseq
      %v263 = vshrl.u32 %v262, 7
      %v264 = vsub.s32 0, %v263
      %v265 = vrot.slane %v260, %v264
      %v275 = vunpack.c.l.b16 %v248
      %v276 = vunpack.c.l.b16 %v249
      %v277 = vunpack.c.l.b16 %v250
      %v278 = vunpack.c.l.b16 %v251
      %v279 = vunpack.c.l.b16 %v252
      %v280 = vunpack.c.l.b16 %v253
      %v281 = vunpack.c.l.b16 %v254
      %v282 = vunpack.c.l.b16 %v255
      %v283 = vpack.c.b16 %v276, %v275
      %v284 = vpack.c.b16 %v278, %v277
      %v285 = vpack.c.b16 %v280, %v279
      %v286 = vpack.c.b16 %v282, %v281
      %v291 = vunpack.c.l.b16 %v256
      %v292 = vunpack.c.l.b16 %v257
      %v293 = vunpack.c.l.b16 %v258
      %v294 = vunpack.c.l.b16 %v259
      %v295 = vpack.c.b16 %v292, %v291
      %v296 = vpack.c.b16 %v294, %v293
      %vm299 = vcmask 261120
      %v301 = vsel %vm299, %v283, 0
      %v304 = vsel %vm299, %v284, 0
      %v307 = vsel %vm299, %v285, 0
      %v310 = vsel %vm299, %v286, 0
      %312 = vmatprep.subr.bf16.mxu0 0
      %313 = vmatpush1.bf16.msra.mxu0 %v295
      %314 = vmatprep.subr.bf16.mxu0 0
      %315 = vmatpush1.bf16.msra.mxu0 %v296
      %316 = vmatprep.subr.bf16.mxu0 0
      %317 = vmatpush1.bf16.msra.mxu0 0
      %318 = vmatprep.subr.bf16.mxu0 0
      %319 = vmatpush1.bf16.msra.mxu0 0
      %320 = vmatprep.subr.bf16.mxu0 0
      %321 = vmatpush1.bf16.msra.mxu0 0
      %322 = vmatprep.subr.bf16.mxu0 0
      %323 = vmatpush1.bf16.msra.mxu0 0
      %324 = vmatprep.subr.bf16.mxu0 0
      %325 = vmatpush1.bf16.msra.mxu0 0
      %326 = vmatprep.subr.bf16.mxu0 0
      %327 = vmatpush1.bf16.msra.mxu0 0
      %328 = vmatprep.subr.bf16.mxu0 0
      %329 = vmatpush1.bf16.msra.mxu0 0
      %330 = vmatprep.subr.bf16.mxu0 0
      %331 = vmatpush1.bf16.msra.mxu0 0
      %332 = vmatprep.subr.bf16.mxu0 0
      %333 = vmatpush1.bf16.msra.mxu0 0
      %334 = vmatprep.subr.bf16.mxu0 0
      %335 = vmatpush1.bf16.msra.mxu0 0
      %336 = vmatprep.subr.bf16.mxu0 0
      %337 = vmatpush1.bf16.msra.mxu0 0
      %338 = vmatprep.subr.bf16.mxu0 0
      %339 = vmatpush1.bf16.msra.mxu0 0
      %340 = vmatprep.subr.bf16.mxu0 0
      %341 = vmatpush1.bf16.msra.mxu0 0
      %342 = vmatprep.subr.bf16.mxu0 0
      %343 = vmatpush1.bf16.msra.mxu0 0
      %344 = vmatprep.mubr.bf16.mxu0 0
      %345 = vmatmul.mubr.bf16.gmra.mrb[0].mxu0 %v301
      %v346 = vpop.f32.mrb[0].mxu0
      %v347 = vadd.f32 %v265, %v346
      %v348 = vpop.f32.mrb[0].mxu0
      %v349 = vpop.f32.mrb[0].mxu0
      %v350 = vadd.f32 %v265, %v349
      %v351 = vpop.f32.mrb[0].mxu0
      %352 = vmatprep.mubr.bf16.mxu0 0
      %353 = vmatmul.mubr.bf16.gmra.mrb[0].mxu0 %v304
      %v354 = vpop.f32.mrb[0].mxu0
      %v355 = vadd.f32 %v265, %v354
      %v356 = vpop.f32.mrb[0].mxu0
      %v357 = vpop.f32.mrb[0].mxu0
      %v358 = vadd.f32 %v265, %v357
      %v359 = vpop.f32.mrb[0].mxu0
      %360 = vmatprep.mubr.bf16.mxu0 0
      %361 = vmatmul.mubr.bf16.gmra.mrb[0].mxu0 %v307
      %v362 = vpop.f32.mrb[0].mxu0
      %v363 = vadd.f32 %v265, %v362
      %v364 = vpop.f32.mrb[0].mxu0
      %v365 = vpop.f32.mrb[0].mxu0
      %v366 = vadd.f32 %v265, %v365
      %v367 = vpop.f32.mrb[0].mxu0
      %368 = vmatprep.mubr.bf16.mxu0 0
      %369 = vmatmul.mubr.bf16.gmra.mrb[0].mxu0 %v310
      %v370 = vpop.f32.mrb[0].mxu0
      %v371 = vadd.f32 %v265, %v370
      %v372 = vpop.f32.mrb[0].mxu0
      %v373 = vpop.f32.mrb[0].mxu0
      %v374 = vadd.f32 %v265, %v373
      %v375 = vpop.f32.mrb[0].mxu0
      %376 = vdwg.mxu0
      %v377 = vmax.f32 %v347, 0.0
      %v378 = vmax.f32 %v350, 0.0
      %v379 = vmax.f32 %v355, 0.0
      %v380 = vmax.f32 %v358, 0.0
      %v381 = vmax.f32 %v363, 0.0
      %v382 = vmax.f32 %v366, 0.0
      %v383 = vmax.f32 %v371, 0.0
      %v384 = vmax.f32 %v374, 0.0
      %v385 = vpack.c.bf16 %v378, %v377
      %v386 = vpack.c.bf16 %v380, %v379
      %v387 = vpack.c.bf16 %v382, %v381
      %v388 = vpack.c.bf16 %v384, %v383
      %v389 = vld [vmem:[%s2] sm:$0xf]
      %v390 = vld [vmem:[%s2 + $0x4] sm:$0xf]
      %v391 = vld [vmem:[%s2 + $0x8] sm:$0xf]
      %v392 = vld [vmem:[%s2 + $0xc] sm:$0xf]
      %v393 = vld [vmem:[%s2 + $0x10] sm:$0xf]
      %v394 = vld [vmem:[%s2 + $0x14] sm:$0xf]
      %v395 = vld [vmem:[%s2 + $0x18] sm:$0xf]
      %v396 = vld [vmem:[%s2 + $0x1c] sm:$0xf]
      %v397 = vld [vmem:[%s2 + $0x20] sm:$0xf]
      %v398 = vld [vmem:[%s2 + $0x24] sm:$0xf]
      %v399 = vld [vmem:[%s2 + $0x28] sm:$0xf]
      %v400 = vld [vmem:[%s2 + $0x2c] sm:$0xf]
      %v401 = vld [vmem:[%s2 + $0x30] sm:$0xf]
      %v402 = vld [vmem:[%s2 + $0x34] sm:$0xf]
      %v403 = vld [vmem:[%s2 + $0x38] sm:$0xf]
      %v404 = vld [vmem:[%s2 + $0x3c] sm:$0xf]
      %s405 = scalar_lea.vmem %s3, 1
      %v406 = vld [vmem:[%s405] sm:$0x1]
      %v408 = vlaneseq
      %v409 = vshrl.u32 %v408, 7
      %v410 = vsub.s32 0, %v409
      %v411 = vrot.slane %v406, %v410
      %v429 = vunpack.c.l.b16 %v389
      %v430 = vunpack.c.l.b16 %v390
      %v431 = vunpack.c.l.b16 %v391
      %v432 = vunpack.c.l.b16 %v392
      %v433 = vunpack.c.l.b16 %v393
      %v434 = vunpack.c.l.b16 %v394
      %v435 = vunpack.c.l.b16 %v395
      %v436 = vunpack.c.l.b16 %v396
      %v437 = vunpack.c.l.b16 %v397
      %v438 = vunpack.c.l.b16 %v398
      %v439 = vunpack.c.l.b16 %v399
      %v440 = vunpack.c.l.b16 %v400
      %v441 = vunpack.c.l.b16 %v401
      %v442 = vunpack.c.l.b16 %v402
      %v443 = vunpack.c.l.b16 %v403
      %v444 = vunpack.c.l.b16 %v404
      %v445 = vpack.c.b16 %v430, %v429
      %v446 = vpack.c.b16 %v432, %v431
      %v447 = vpack.c.b16 %v434, %v433
      %v448 = vpack.c.b16 %v436, %v435
      %v449 = vpack.c.b16 %v438, %v437
      %v450 = vpack.c.b16 %v440, %v439
      %v451 = vpack.c.b16 %v442, %v441
      %v452 = vpack.c.b16 %v444, %v443
      %461 = vmatprep.subr.bf16.mxu0 0
      %462 = vmatpush1.bf16.msra.mxu0 %v445
      %463 = vmatprep.subr.bf16.mxu0 0
      %464 = vmatpush1.bf16.msra.mxu0 %v446
      %465 = vmatprep.subr.bf16.mxu0 0
      %466 = vmatpush1.bf16.msra.mxu0 %v447
      %467 = vmatprep.subr.bf16.mxu0 0
      %468 = vmatpush1.bf16.msra.mxu0 %v448
      %469 = vmatprep.subr.bf16.mxu0 0
      %470 = vmatpush1.bf16.msra.mxu0 %v449
      %471 = vmatprep.subr.bf16.mxu0 0
      %472 = vmatpush1.bf16.msra.mxu0 %v450
      %473 = vmatprep.subr.bf16.mxu0 0
      %474 = vmatpush1.bf16.msra.mxu0 %v451
      %475 = vmatprep.subr.bf16.mxu0 0
      %476 = vmatpush1.bf16.msra.mxu0 %v452
      %477 = vmatprep.subr.bf16.mxu0 0
      %478 = vmatpush1.bf16.msra.mxu0 0
      %479 = vmatprep.subr.bf16.mxu0 0
      %480 = vmatpush1.bf16.msra.mxu0 0
      %481 = vmatprep.subr.bf16.mxu0 0
      %482 = vmatpush1.bf16.msra.mxu0 0
      %483 = vmatprep.subr.bf16.mxu0 0
      %484 = vmatpush1.bf16.msra.mxu0 0
      %485 = vmatprep.subr.bf16.mxu0 0
      %486 = vmatpush1.bf16.msra.mxu0 0
      %487 = vmatprep.subr.bf16.mxu0 0
      %488 = vmatpush1.bf16.msra.mxu0 0
      %489 = vmatprep.subr.bf16.mxu0 0
      %490 = vmatpush1.bf16.msra.mxu0 0
      %491 = vmatprep.subr.bf16.mxu0 0
      %492 = vmatpush1.bf16.msra.mxu0 0
      %493 = vmatprep.mubr.bf16.mxu0 0
      %494 = vmatmul.mubr.bf16.gmra.mrb[0].mxu0 %v385
      %v495 = vpop.f32.mrb[0].mxu0
      %v496 = vadd.f32 %v411, %v495
      %v497 = vpop.f32.mrb[0].mxu0
      %v498 = vpop.f32.mrb[0].mxu0
      %v499 = vadd.f32 %v411, %v498
      %v500 = vpop.f32.mrb[0].mxu0
      %501 = vmatprep.mubr.bf16.mxu0 0
      %502 = vmatmul.mubr.bf16.gmra.mrb[0].mxu0 %v386
      %v503 = vpop.f32.mrb[0].mxu0
      %v504 = vadd.f32 %v411, %v503
      %v505 = vpop.f32.mrb[0].mxu0
      %v506 = vpop.f32.mrb[0].mxu0
      %v507 = vadd.f32 %v411, %v506
      %v508 = vpop.f32.mrb[0].mxu0
      %509 = vmatprep.mubr.bf16.mxu0 0
      %510 = vmatmul.mubr.bf16.gmra.mrb[0].mxu0 %v387
      %v511 = vpop.f32.mrb[0].mxu0
      %v512 = vadd.f32 %v411, %v511
      %v513 = vpop.f32.mrb[0].mxu0
      %v514 = vpop.f32.mrb[0].mxu0
      %v515 = vadd.f32 %v411, %v514
      %v516 = vpop.f32.mrb[0].mxu0
      %517 = vmatprep.mubr.bf16.mxu0 0
      %518 = vmatmul.mubr.bf16.gmra.mrb[0].mxu0 %v388
      %v519 = vpop.f32.mrb[0].mxu0
      %v520 = vadd.f32 %v411, %v519
      %v521 = vpop.f32.mrb[0].mxu0
      %v522 = vpop.f32.mrb[0].mxu0
      %v523 = vadd.f32 %v411, %v522
      %v524 = vpop.f32.mrb[0].mxu0
      %525 = vdwg.mxu0
      %v526 = vxor.u32 %v496, 2147483648
      %v527 = vxor.u32 %v499, 2147483648
      %v528 = vxor.u32 %v504, 2147483648
      %v529 = vxor.u32 %v507, 2147483648
      %v530 = vxor.u32 %v512, 2147483648
      %v531 = vxor.u32 %v515, 2147483648
      %v532 = vxor.u32 %v520, 2147483648
      %v533 = vxor.u32 %v523, 2147483648
      %v534 = vmul.f32 %v526, 1.442695
      %v535 = vpow.pop %v534
      %v536 = vmul.f32 %v527, 1.442695
      %v537 = vpow.pop %v536
      %v538 = vmul.f32 %v528, 1.442695
      %v539 = vpow.pop %v538
      %v540 = vmul.f32 %v529, 1.442695
      %v541 = vpow.pop %v540
      %v542 = vmul.f32 %v530, 1.442695
      %v543 = vpow.pop %v542
      %v544 = vmul.f32 %v531, 1.442695
      %v545 = vpow.pop %v544
      %v546 = vmul.f32 %v532, 1.442695
      %v547 = vpow.pop %v546
      %v548 = vmul.f32 %v533, 1.442695
      %v549 = vpow.pop %v548
      %v550 = vadd.f32 %v535, 1.0
      %v551 = vadd.f32 %v537, 1.0
      %v552 = vadd.f32 %v539, 1.0
      %v553 = vadd.f32 %v541, 1.0
      %v554 = vadd.f32 %v543, 1.0
      %v555 = vadd.f32 %v545, 1.0
      %v556 = vadd.f32 %v547, 1.0
      %v557 = vadd.f32 %v549, 1.0
      %v558 = vrcp.pop %v550
      %v559 = vmul.f32 1.0, %v558
      %v560 = vrcp.pop %v551
      %v561 = vmul.f32 1.0, %v560
      %v562 = vrcp.pop %v552
      %v563 = vmul.f32 1.0, %v562
      %v564 = vrcp.pop %v553
      %v565 = vmul.f32 1.0, %v564
      %v566 = vrcp.pop %v554
      %v567 = vmul.f32 1.0, %v566
      %v568 = vrcp.pop %v555
      %v569 = vmul.f32 1.0, %v568
      %v570 = vrcp.pop %v556
      %v571 = vmul.f32 1.0, %v570
      %v572 = vrcp.pop %v557
      %v573 = vmul.f32 1.0, %v572
      %v574 = vmul.f32 %v496, %v559
      %v575 = vmul.f32 %v499, %v561
      %v576 = vmul.f32 %v504, %v563
      %v577 = vmul.f32 %v507, %v565
      %v578 = vmul.f32 %v512, %v567
      %v579 = vmul.f32 %v515, %v569
      %v580 = vmul.f32 %v520, %v571
      %v581 = vmul.f32 %v523, %v573
      %582 = vst [vmem:[%s231 + $0x2] sm:$0xff] %v574
      %583 = vst [vmem:[%s231 + $0x12] sm:$0xff] %v575
      %584 = vst [vmem:[%s231 + $0x22] sm:$0xff] %v576
      %585 = vst [vmem:[%s231 + $0x32] sm:$0xff] %v577
      %586 = vst [vmem:[%s231 + $0x42] sm:$0xff] %v578
      %587 = vst [vmem:[%s231 + $0x52] sm:$0xff] %v579
      %588 = vst [vmem:[%s231 + $0x62] sm:$0xff] %v580
      %589 = vst [vmem:[%s231 + $0x72] sm:$0xff] %v581
      %v590 = vld [vmem:[#allocation2] sm:$0xff]
      %v591 = vld [vmem:[#allocation2 + $0x10] sm:$0xff]
      %v592 = vld [vmem:[#allocation2 + $0x20] sm:$0xff]
      %v593 = vld [vmem:[#allocation2 + $0x30] sm:$0xff]
      %v594 = vld [vmem:[#allocation2 + $0x40] sm:$0xff]
      %v595 = vld [vmem:[#allocation2 + $0x50] sm:$0xff]
      %v596 = vld [vmem:[#allocation2 + $0x60] sm:$0xff]
      %v597 = vld [vmem:[#allocation2 + $0x70] sm:$0xff]
      %v598 = vld [vmem:[%s4] sm:$0x1]
      %v600 = vlaneseq
      %v601 = vshrl.u32 %v600, 7
      %v602 = vsub.s32 0, %v601
      %v603 = vrot.slane %v598, %v602
      %v605 = vmul.f32 %v590, %v603
      %v606 = vmul.f32 %v591, %v603
      %v607 = vmul.f32 %v592, %v603
      %v608 = vmul.f32 %v593, %v603
      %v609 = vmul.f32 %v594, %v603
      %v610 = vmul.f32 %v595, %v603
      %v611 = vmul.f32 %v596, %v603
      %v612 = vmul.f32 %v597, %v603
      %v613 = vld [vmem:[#allocation2 + $0x1] sm:$0xff]
      %v614 = vld [vmem:[#allocation2 + $0x11] sm:$0xff]
      %v615 = vld [vmem:[#allocation2 + $0x21] sm:$0xff]
      %v616 = vld [vmem:[#allocation2 + $0x31] sm:$0xff]
      %v617 = vld [vmem:[#allocation2 + $0x41] sm:$0xff]
      %v618 = vld [vmem:[#allocation2 + $0x51] sm:$0xff]
      %v619 = vld [vmem:[#allocation2 + $0x61] sm:$0xff]
      %v620 = vld [vmem:[#allocation2 + $0x71] sm:$0xff]
      %s621 = scalar_lea.vmem %s4, 1
      %v622 = vld [vmem:[%s621] sm:$0x1]
      %v624 = vlaneseq
      %v625 = vshrl.u32 %v624, 7
      %v626 = vsub.s32 0, %v625
      %v627 = vrot.slane %v622, %v626
      %v629 = vmul.f32 %v613, %v627
      %v630 = vmul.f32 %v614, %v627
      %v631 = vmul.f32 %v615, %v627
      %v632 = vmul.f32 %v616, %v627
      %v633 = vmul.f32 %v617, %v627
      %v634 = vmul.f32 %v618, %v627
      %v635 = vmul.f32 %v619, %v627
      %v636 = vmul.f32 %v620, %v627
      %v637 = vadd.f32 %v605, %v629
      %v638 = vadd.f32 %v606, %v630
      %v639 = vadd.f32 %v607, %v631
      %v640 = vadd.f32 %v608, %v632
      %v641 = vadd.f32 %v609, %v633
      %v642 = vadd.f32 %v610, %v634
      %v643 = vadd.f32 %v611, %v635
      %v644 = vadd.f32 %v612, %v636
      %v645 = vld [vmem:[#allocation2 + $0x2] sm:$0xff]
      %v646 = vld [vmem:[#allocation2 + $0x12] sm:$0xff]
      %v647 = vld [vmem:[#allocation2 + $0x22] sm:$0xff]
      %v648 = vld [vmem:[#allocation2 + $0x32] sm:$0xff]
      %v649 = vld [vmem:[#allocation2 + $0x42] sm:$0xff]
      %v650 = vld [vmem:[#allocation2 + $0x52] sm:$0xff]
      %v651 = vld [vmem:[#allocation2 + $0x62] sm:$0xff]
      %v652 = vld [vmem:[#allocation2 + $0x72] sm:$0xff]
      %s653 = scalar_lea.vmem %s4, 2
      %v654 = vld [vmem:[%s653] sm:$0x1]
      %v656 = vlaneseq
      %v657 = vshrl.u32 %v656, 7
      %v658 = vsub.s32 0, %v657
      %v659 = vrot.slane %v654, %v658
      %v661 = vmul.f32 %v645, %v659
      %v662 = vmul.f32 %v646, %v659
      %v663 = vmul.f32 %v647, %v659
      %v664 = vmul.f32 %v648, %v659
      %v665 = vmul.f32 %v649, %v659
      %v666 = vmul.f32 %v650, %v659
      %v667 = vmul.f32 %v651, %v659
      %v668 = vmul.f32 %v652, %v659
      %v669 = vadd.f32 %v637, %v661
      %v670 = vadd.f32 %v638, %v662
      %v671 = vadd.f32 %v639, %v663
      %v672 = vadd.f32 %v640, %v664
      %v673 = vadd.f32 %v641, %v665
      %v674 = vadd.f32 %v642, %v666
      %v675 = vadd.f32 %v643, %v667
      %v676 = vadd.f32 %v644, %v668
      %v677 = vld [vmem:[#allocation2 + $0x3] sm:$0xff]
      %v678 = vld [vmem:[#allocation2 + $0x13] sm:$0xff]
      %v679 = vld [vmem:[#allocation2 + $0x23] sm:$0xff]
      %v680 = vld [vmem:[#allocation2 + $0x33] sm:$0xff]
      %v681 = vld [vmem:[#allocation2 + $0x43] sm:$0xff]
      %v682 = vld [vmem:[#allocation2 + $0x53] sm:$0xff]
      %v683 = vld [vmem:[#allocation2 + $0x63] sm:$0xff]
      %v684 = vld [vmem:[#allocation2 + $0x73] sm:$0xff]
      %s685 = scalar_lea.vmem %s4, 3
      %v686 = vld [vmem:[%s685] sm:$0x1]
      %v688 = vlaneseq
      %v689 = vshrl.u32 %v688, 7
      %v690 = vsub.s32 0, %v689
      %v691 = vrot.slane %v686, %v690
      %v693 = vmul.f32 %v677, %v691
      %v694 = vmul.f32 %v678, %v691
      %v695 = vmul.f32 %v679, %v691
      %v696 = vmul.f32 %v680, %v691
      %v697 = vmul.f32 %v681, %v691
      %v698 = vmul.f32 %v682, %v691
      %v699 = vmul.f32 %v683, %v691
      %v700 = vmul.f32 %v684, %v691
      %v701 = vadd.f32 %v669, %v693
      %v702 = vadd.f32 %v670, %v694
      %v703 = vadd.f32 %v671, %v695
      %v704 = vadd.f32 %v672, %v696
      %v705 = vadd.f32 %v673, %v697
      %v706 = vadd.f32 %v674, %v698
      %v707 = vadd.f32 %v675, %v699
      %v708 = vadd.f32 %v676, %v700
      %v709 = vld [vmem:[#allocation2 + $0x4] sm:$0xff]
      %v710 = vld [vmem:[#allocation2 + $0x14] sm:$0xff]
      %v711 = vld [vmem:[#allocation2 + $0x24] sm:$0xff]
      %v712 = vld [vmem:[#allocation2 + $0x34] sm:$0xff]
      %v713 = vld [vmem:[#allocation2 + $0x44] sm:$0xff]
      %v714 = vld [vmem:[#allocation2 + $0x54] sm:$0xff]
      %v715 = vld [vmem:[#allocation2 + $0x64] sm:$0xff]
      %v716 = vld [vmem:[#allocation2 + $0x74] sm:$0xff]
      %s717 = scalar_lea.vmem %s4, 4
      %v718 = vld [vmem:[%s717] sm:$0x1]
      %v720 = vlaneseq
      %v721 = vshrl.u32 %v720, 7
      %v722 = vsub.s32 0, %v721
      %v723 = vrot.slane %v718, %v722
      %v725 = vmul.f32 %v709, %v723
      %v726 = vmul.f32 %v710, %v723
      %v727 = vmul.f32 %v711, %v723
      %v728 = vmul.f32 %v712, %v723
      %v729 = vmul.f32 %v713, %v723
      %v730 = vmul.f32 %v714, %v723
      %v731 = vmul.f32 %v715, %v723
      %v732 = vmul.f32 %v716, %v723
      %v733 = vadd.f32 %v701, %v725
      %v734 = vadd.f32 %v702, %v726
      %v735 = vadd.f32 %v703, %v727
      %v736 = vadd.f32 %v704, %v728
      %v737 = vadd.f32 %v705, %v729
      %v738 = vadd.f32 %v706, %v730
      %v739 = vadd.f32 %v707, %v731
      %v740 = vadd.f32 %v708, %v732
      %s741 = scalar_lea.vmem [#allocation2], 16
      %v742 = vld [vmem:[%s741] sm:$0xff]
      %v743 = vld [vmem:[%s741 + $0x10] sm:$0xff]
      %v744 = vld [vmem:[%s741 + $0x20] sm:$0xff]
      %v745 = vld [vmem:[%s741 + $0x30] sm:$0xff]
      %v746 = vld [vmem:[%s741 + $0x40] sm:$0xff]
      %v747 = vld [vmem:[%s741 + $0x50] sm:$0xff]
      %v748 = vld [vmem:[%s741 + $0x60] sm:$0xff]
      %v749 = vld [vmem:[%s741 + $0x70] sm:$0xff]
      %s750 = scalar_lea.vmem %s4, 5
      %v751 = vld [vmem:[%s750] sm:$0x1]
      %v753 = vlaneseq
      %v754 = vshrl.u32 %v753, 7
      %v755 = vsub.s32 0, %v754
      %v756 = vrot.slane %v751, %v755
      %v758 = vmul.f32 %v742, %v756
      %v759 = vmul.f32 %v743, %v756
      %v760 = vmul.f32 %v744, %v756
      %v761 = vmul.f32 %v745, %v756
      %v762 = vmul.f32 %v746, %v756
      %v763 = vmul.f32 %v747, %v756
      %v764 = vmul.f32 %v748, %v756
      %v765 = vmul.f32 %v749, %v756
      %v766 = vadd.f32 %v733, %v758
      %v767 = vadd.f32 %v734, %v759
      %v768 = vadd.f32 %v735, %v760
      %v769 = vadd.f32 %v736, %v761
      %v770 = vadd.f32 %v737, %v762
      %v771 = vadd.f32 %v738, %v763
      %v772 = vadd.f32 %v739, %v764
      %v773 = vadd.f32 %v740, %v765
      %v774 = vld [vmem:[%s741 + $0x1] sm:$0xff]
      %v775 = vld [vmem:[%s741 + $0x11] sm:$0xff]
      %v776 = vld [vmem:[%s741 + $0x21] sm:$0xff]
      %v777 = vld [vmem:[%s741 + $0x31] sm:$0xff]
      %v778 = vld [vmem:[%s741 + $0x41] sm:$0xff]
      %v779 = vld [vmem:[%s741 + $0x51] sm:$0xff]
      %v780 = vld [vmem:[%s741 + $0x61] sm:$0xff]
      %v781 = vld [vmem:[%s741 + $0x71] sm:$0xff]
      %s782 = scalar_lea.vmem %s4, 6
      %v783 = vld [vmem:[%s782] sm:$0x1]
      %v785 = vlaneseq
      %v786 = vshrl.u32 %v785, 7
      %v787 = vsub.s32 0, %v786
      %v788 = vrot.slane %v783, %v787
      %v790 = vmul.f32 %v774, %v788
      %v791 = vmul.f32 %v775, %v788
      %v792 = vmul.f32 %v776, %v788
      %v793 = vmul.f32 %v777, %v788
      %v794 = vmul.f32 %v778, %v788
      %v795 = vmul.f32 %v779, %v788
      %v796 = vmul.f32 %v780, %v788
      %v797 = vmul.f32 %v781, %v788
      %v798 = vadd.f32 %v766, %v790
      %v799 = vadd.f32 %v767, %v791
      %v800 = vadd.f32 %v768, %v792
      %v801 = vadd.f32 %v769, %v793
      %v802 = vadd.f32 %v770, %v794
      %v803 = vadd.f32 %v771, %v795
      %v804 = vadd.f32 %v772, %v796
      %v805 = vadd.f32 %v773, %v797
      %v806 = vld [vmem:[%s741 + $0x2] sm:$0xff]
      %v807 = vld [vmem:[%s741 + $0x12] sm:$0xff]
      %v808 = vld [vmem:[%s741 + $0x22] sm:$0xff]
      %v809 = vld [vmem:[%s741 + $0x32] sm:$0xff]
      %v810 = vld [vmem:[%s741 + $0x42] sm:$0xff]
      %v811 = vld [vmem:[%s741 + $0x52] sm:$0xff]
      %v812 = vld [vmem:[%s741 + $0x62] sm:$0xff]
      %v813 = vld [vmem:[%s741 + $0x72] sm:$0xff]
      %s814 = scalar_lea.vmem %s4, 7
      %v815 = vld [vmem:[%s814] sm:$0x1]
      %v817 = vlaneseq
      %v818 = vshrl.u32 %v817, 7
      %v819 = vsub.s32 0, %v818
      %v820 = vrot.slane %v815, %v819
      %v822 = vmul.f32 %v806, %v820
      %v823 = vmul.f32 %v807, %v820
      %v824 = vmul.f32 %v808, %v820
      %v825 = vmul.f32 %v809, %v820
      %v826 = vmul.f32 %v810, %v820
      %v827 = vmul.f32 %v811, %v820
      %v828 = vmul.f32 %v812, %v820
      %v829 = vmul.f32 %v813, %v820
      %v830 = vadd.f32 %v798, %v822
      %v831 = vadd.f32 %v799, %v823
      %v832 = vadd.f32 %v800, %v824
      %v833 = vadd.f32 %v801, %v825
      %v834 = vadd.f32 %v802, %v826
      %v835 = vadd.f32 %v803, %v827
      %v836 = vadd.f32 %v804, %v828
      %v837 = vadd.f32 %v805, %v829
      %v838 = vld [vmem:[%s741 + $0x3] sm:$0xff]
      %v839 = vld [vmem:[%s741 + $0x13] sm:$0xff]
      %v840 = vld [vmem:[%s741 + $0x23] sm:$0xff]
      %v841 = vld [vmem:[%s741 + $0x33] sm:$0xff]
      %v842 = vld [vmem:[%s741 + $0x43] sm:$0xff]
      %v843 = vld [vmem:[%s741 + $0x53] sm:$0xff]
      %v844 = vld [vmem:[%s741 + $0x63] sm:$0xff]
      %v845 = vld [vmem:[%s741 + $0x73] sm:$0xff]
      %s846 = scalar_lea.vmem %s4, 8
      %v847 = vld [vmem:[%s846] sm:$0x1]
      %v849 = vlaneseq
      %v850 = vshrl.u32 %v849, 7
      %v851 = vsub.s32 0, %v850
      %v852 = vrot.slane %v847, %v851
      %v854 = vmul.f32 %v838, %v852
      %v855 = vmul.f32 %v839, %v852
      %v856 = vmul.f32 %v840, %v852
      %v857 = vmul.f32 %v841, %v852
      %v858 = vmul.f32 %v842, %v852
      %v859 = vmul.f32 %v843, %v852
      %v860 = vmul.f32 %v844, %v852
      %v861 = vmul.f32 %v845, %v852
      %v862 = vadd.f32 %v830, %v854
      %v863 = vadd.f32 %v831, %v855
      %v864 = vadd.f32 %v832, %v856
      %v865 = vadd.f32 %v833, %v857
      %v866 = vadd.f32 %v834, %v858
      %v867 = vadd.f32 %v835, %v859
      %v868 = vadd.f32 %v836, %v860
      %v869 = vadd.f32 %v837, %v861
      %v870 = vld [vmem:[%s741 + $0x4] sm:$0xff]
      %v871 = vld [vmem:[%s741 + $0x14] sm:$0xff]
      %v872 = vld [vmem:[%s741 + $0x24] sm:$0xff]
      %v873 = vld [vmem:[%s741 + $0x34] sm:$0xff]
      %v874 = vld [vmem:[%s741 + $0x44] sm:$0xff]
      %v875 = vld [vmem:[%s741 + $0x54] sm:$0xff]
      %v876 = vld [vmem:[%s741 + $0x64] sm:$0xff]
      %v877 = vld [vmem:[%s741 + $0x74] sm:$0xff]
      %s878 = scalar_lea.vmem %s4, 9
      %v879 = vld [vmem:[%s878] sm:$0x1]
      %v881 = vlaneseq
      %v882 = vshrl.u32 %v881, 7
      %v883 = vsub.s32 0, %v882
      %v884 = vrot.slane %v879, %v883
      %v886 = vmul.f32 %v870, %v884
      %v887 = vmul.f32 %v871, %v884
      %v888 = vmul.f32 %v872, %v884
      %v889 = vmul.f32 %v873, %v884
      %v890 = vmul.f32 %v874, %v884
      %v891 = vmul.f32 %v875, %v884
      %v892 = vmul.f32 %v876, %v884
      %v893 = vmul.f32 %v877, %v884
      %v894 = vadd.f32 %v862, %v886
      %v895 = vadd.f32 %v863, %v887
      %v896 = vadd.f32 %v864, %v888
      %v897 = vadd.f32 %v865, %v889
      %v898 = vadd.f32 %v866, %v890
      %v899 = vadd.f32 %v867, %v891
      %v900 = vadd.f32 %v868, %v892
      %v901 = vadd.f32 %v869, %v893
      %v902 = vld [vmem:[%s231] sm:$0xff]
      %v903 = vld [vmem:[%s231 + $0x10] sm:$0xff]
      %v904 = vld [vmem:[%s231 + $0x20] sm:$0xff]
      %v905 = vld [vmem:[%s231 + $0x30] sm:$0xff]
      %v906 = vld [vmem:[%s231 + $0x40] sm:$0xff]
      %v907 = vld [vmem:[%s231 + $0x50] sm:$0xff]
      %v908 = vld [vmem:[%s231 + $0x60] sm:$0xff]
      %v909 = vld [vmem:[%s231 + $0x70] sm:$0xff]
      %s910 = scalar_lea.vmem %s4, 10
      %v911 = vld [vmem:[%s910] sm:$0x1]
      %v913 = vlaneseq
      %v914 = vshrl.u32 %v913, 7
      %v915 = vsub.s32 0, %v914
      %v916 = vrot.slane %v911, %v915
      %v918 = vmul.f32 %v902, %v916
      %v919 = vmul.f32 %v903, %v916
      %v920 = vmul.f32 %v904, %v916
      %v921 = vmul.f32 %v905, %v916
      %v922 = vmul.f32 %v906, %v916
      %v923 = vmul.f32 %v907, %v916
      %v924 = vmul.f32 %v908, %v916
      %v925 = vmul.f32 %v909, %v916
      %v926 = vadd.f32 %v894, %v918
      %v927 = vadd.f32 %v895, %v919
      %v928 = vadd.f32 %v896, %v920
      %v929 = vadd.f32 %v897, %v921
      %v930 = vadd.f32 %v898, %v922
      %v931 = vadd.f32 %v899, %v923
      %v932 = vadd.f32 %v900, %v924
      %v933 = vadd.f32 %v901, %v925
      %v934 = vld [vmem:[%s231 + $0x1] sm:$0xff]
      %v935 = vld [vmem:[%s231 + $0x11] sm:$0xff]
      %v936 = vld [vmem:[%s231 + $0x21] sm:$0xff]
      %v937 = vld [vmem:[%s231 + $0x31] sm:$0xff]
      %v938 = vld [vmem:[%s231 + $0x41] sm:$0xff]
      %v939 = vld [vmem:[%s231 + $0x51] sm:$0xff]
      %v940 = vld [vmem:[%s231 + $0x61] sm:$0xff]
      %v941 = vld [vmem:[%s231 + $0x71] sm:$0xff]
      %s942 = scalar_lea.vmem %s4, 11
      %v943 = vld [vmem:[%s942] sm:$0x1]
      %v945 = vlaneseq
      %v946 = vshrl.u32 %v945, 7
      %v947 = vsub.s32 0, %v946
      %v948 = vrot.slane %v943, %v947
      %v950 = vmul.f32 %v934, %v948
      %v951 = vmul.f32 %v935, %v948
      %v952 = vmul.f32 %v936, %v948
      %v953 = vmul.f32 %v937, %v948
      %v954 = vmul.f32 %v938, %v948
      %v955 = vmul.f32 %v939, %v948
      %v956 = vmul.f32 %v940, %v948
      %v957 = vmul.f32 %v941, %v948
      %v958 = vadd.f32 %v926, %v950
      %v959 = vadd.f32 %v927, %v951
      %v960 = vadd.f32 %v928, %v952
      %v961 = vadd.f32 %v929, %v953
      %v962 = vadd.f32 %v930, %v954
      %v963 = vadd.f32 %v931, %v955
      %v964 = vadd.f32 %v932, %v956
      %v965 = vadd.f32 %v933, %v957
      %v966 = vld [vmem:[%s231 + $0x2] sm:$0xff]
      %v967 = vld [vmem:[%s231 + $0x12] sm:$0xff]
      %v968 = vld [vmem:[%s231 + $0x22] sm:$0xff]
      %v969 = vld [vmem:[%s231 + $0x32] sm:$0xff]
      %v970 = vld [vmem:[%s231 + $0x42] sm:$0xff]
      %v971 = vld [vmem:[%s231 + $0x52] sm:$0xff]
      %v972 = vld [vmem:[%s231 + $0x62] sm:$0xff]
      %v973 = vld [vmem:[%s231 + $0x72] sm:$0xff]
      %s974 = scalar_lea.vmem %s4, 12
      %v975 = vld [vmem:[%s974] sm:$0x1]
      %v977 = vlaneseq
      %v978 = vshrl.u32 %v977, 7
      %v979 = vsub.s32 0, %v978
      %v980 = vrot.slane %v975, %v979
      %v982 = vmul.f32 %v966, %v980
      %v983 = vmul.f32 %v967, %v980
      %v984 = vmul.f32 %v968, %v980
      %v985 = vmul.f32 %v969, %v980
      %v986 = vmul.f32 %v970, %v980
      %v987 = vmul.f32 %v971, %v980
      %v988 = vmul.f32 %v972, %v980
      %v989 = vmul.f32 %v973, %v980
      %v990 = vadd.f32 %v958, %v982
      %v991 = vadd.f32 %v959, %v983
      %v992 = vadd.f32 %v960, %v984
      %v993 = vadd.f32 %v961, %v985
      %v994 = vadd.f32 %v962, %v986
      %v995 = vadd.f32 %v963, %v987
      %v996 = vadd.f32 %v964, %v988
      %v997 = vadd.f32 %v965, %v989
      %v998 = vld [vmem:[%s231 + $0x3] sm:$0xff]
      %v999 = vld [vmem:[%s231 + $0x13] sm:$0xff]
      %v1000 = vld [vmem:[%s231 + $0x23] sm:$0xff]
      %v1001 = vld [vmem:[%s231 + $0x33] sm:$0xff]
      %v1002 = vld [vmem:[%s231 + $0x43] sm:$0xff]
      %v1003 = vld [vmem:[%s231 + $0x53] sm:$0xff]
      %v1004 = vld [vmem:[%s231 + $0x63] sm:$0xff]
      %v1005 = vld [vmem:[%s231 + $0x73] sm:$0xff]
      %s1006 = scalar_lea.vmem %s4, 13
      %v1007 = vld [vmem:[%s1006] sm:$0x1]
      %v1009 = vlaneseq
      %v1010 = vshrl.u32 %v1009, 7
      %v1011 = vsub.s32 0, %v1010
      %v1012 = vrot.slane %v1007, %v1011
      %v1014 = vmul.f32 %v998, %v1012
      %v1015 = vmul.f32 %v999, %v1012
      %v1016 = vmul.f32 %v1000, %v1012
      %v1017 = vmul.f32 %v1001, %v1012
      %v1018 = vmul.f32 %v1002, %v1012
      %v1019 = vmul.f32 %v1003, %v1012
      %v1020 = vmul.f32 %v1004, %v1012
      %v1021 = vmul.f32 %v1005, %v1012
      %v1022 = vadd.f32 %v990, %v1014
      %v1023 = vadd.f32 %v991, %v1015
      %v1024 = vadd.f32 %v992, %v1016
      %v1025 = vadd.f32 %v993, %v1017
      %v1026 = vadd.f32 %v994, %v1018
      %v1027 = vadd.f32 %v995, %v1019
      %v1028 = vadd.f32 %v996, %v1020
      %v1029 = vadd.f32 %v997, %v1021
      %v1030 = vld [vmem:[%s231 + $0x4] sm:$0xff]
      %v1031 = vld [vmem:[%s231 + $0x14] sm:$0xff]
      %v1032 = vld [vmem:[%s231 + $0x24] sm:$0xff]
      %v1033 = vld [vmem:[%s231 + $0x34] sm:$0xff]
      %v1034 = vld [vmem:[%s231 + $0x44] sm:$0xff]
      %v1035 = vld [vmem:[%s231 + $0x54] sm:$0xff]
      %v1036 = vld [vmem:[%s231 + $0x64] sm:$0xff]
      %v1037 = vld [vmem:[%s231 + $0x74] sm:$0xff]
      %s1038 = scalar_lea.vmem %s4, 14
      %v1039 = vld [vmem:[%s1038] sm:$0x1]
      %v1041 = vlaneseq
      %v1042 = vshrl.u32 %v1041, 7
      %v1043 = vsub.s32 0, %v1042
      %v1044 = vrot.slane %v1039, %v1043
      %v1046 = vmul.f32 %v1030, %v1044
      %v1047 = vmul.f32 %v1031, %v1044
      %v1048 = vmul.f32 %v1032, %v1044
      %v1049 = vmul.f32 %v1033, %v1044
      %v1050 = vmul.f32 %v1034, %v1044
      %v1051 = vmul.f32 %v1035, %v1044
      %v1052 = vmul.f32 %v1036, %v1044
      %v1053 = vmul.f32 %v1037, %v1044
      %v1054 = vadd.f32 %v1022, %v1046
      %v1055 = vadd.f32 %v1023, %v1047
      %v1056 = vadd.f32 %v1024, %v1048
      %v1057 = vadd.f32 %v1025, %v1049
      %v1058 = vadd.f32 %v1026, %v1050
      %v1059 = vadd.f32 %v1027, %v1051
      %v1060 = vadd.f32 %v1028, %v1052
      %v1061 = vadd.f32 %v1029, %v1053
      %s1062 = scalar_lea.vmem [#allocation2], 48
      %v1063 = vld [vmem:[%s1062] sm:$0xff]
      %v1064 = vld [vmem:[%s1062 + $0x10] sm:$0xff]
      %v1065 = vld [vmem:[%s1062 + $0x20] sm:$0xff]
      %v1066 = vld [vmem:[%s1062 + $0x30] sm:$0xff]
      %v1067 = vld [vmem:[%s1062 + $0x40] sm:$0xff]
      %v1068 = vld [vmem:[%s1062 + $0x50] sm:$0xff]
      %v1069 = vld [vmem:[%s1062 + $0x60] sm:$0xff]
      %v1070 = vld [vmem:[%s1062 + $0x70] sm:$0xff]
      %s1071 = scalar_lea.vmem %s4, 15
      %v1072 = vld [vmem:[%s1071] sm:$0x1]
      %v1074 = vlaneseq
      %v1075 = vshrl.u32 %v1074, 7
      %v1076 = vsub.s32 0, %v1075
      %v1077 = vrot.slane %v1072, %v1076
      %v1079 = vmul.f32 %v1063, %v1077
      %v1080 = vmul.f32 %v1064, %v1077
      %v1081 = vmul.f32 %v1065, %v1077
      %v1082 = vmul.f32 %v1066, %v1077
      %v1083 = vmul.f32 %v1067, %v1077
      %v1084 = vmul.f32 %v1068, %v1077
      %v1085 = vmul.f32 %v1069, %v1077
      %v1086 = vmul.f32 %v1070, %v1077
      %v1087 = vadd.f32 %v1054, %v1079
      %v1088 = vadd.f32 %v1055, %v1080
      %v1089 = vadd.f32 %v1056, %v1081
      %v1090 = vadd.f32 %v1057, %v1082
      %v1091 = vadd.f32 %v1058, %v1083
      %v1092 = vadd.f32 %v1059, %v1084
      %v1093 = vadd.f32 %v1060, %v1085
      %v1094 = vadd.f32 %v1061, %v1086
      %v1095 = vld [vmem:[%s1062 + $0x1] sm:$0xff]
      %v1096 = vld [vmem:[%s1062 + $0x11] sm:$0xff]
      %v1097 = vld [vmem:[%s1062 + $0x21] sm:$0xff]
      %v1098 = vld [vmem:[%s1062 + $0x31] sm:$0xff]
      %v1099 = vld [vmem:[%s1062 + $0x41] sm:$0xff]
      %v1100 = vld [vmem:[%s1062 + $0x51] sm:$0xff]
      %v1101 = vld [vmem:[%s1062 + $0x61] sm:$0xff]
      %v1102 = vld [vmem:[%s1062 + $0x71] sm:$0xff]
      %s1103 = scalar_lea.vmem %s4, 16
      %v1104 = vld [vmem:[%s1103] sm:$0x1]
      %v1106 = vlaneseq
      %v1107 = vshrl.u32 %v1106, 7
      %v1108 = vsub.s32 0, %v1107
      %v1109 = vrot.slane %v1104, %v1108
      %v1111 = vmul.f32 %v1095, %v1109
      %v1112 = vmul.f32 %v1096, %v1109
      %v1113 = vmul.f32 %v1097, %v1109
      %v1114 = vmul.f32 %v1098, %v1109
      %v1115 = vmul.f32 %v1099, %v1109
      %v1116 = vmul.f32 %v1100, %v1109
      %v1117 = vmul.f32 %v1101, %v1109
      %v1118 = vmul.f32 %v1102, %v1109
      %v1119 = vadd.f32 %v1087, %v1111
      %v1120 = vadd.f32 %v1088, %v1112
      %v1121 = vadd.f32 %v1089, %v1113
      %v1122 = vadd.f32 %v1090, %v1114
      %v1123 = vadd.f32 %v1091, %v1115
      %v1124 = vadd.f32 %v1092, %v1116
      %v1125 = vadd.f32 %v1093, %v1117
      %v1126 = vadd.f32 %v1094, %v1118
      %v1127 = vld [vmem:[%s1062 + $0x2] sm:$0xff]
      %v1128 = vld [vmem:[%s1062 + $0x12] sm:$0xff]
      %v1129 = vld [vmem:[%s1062 + $0x22] sm:$0xff]
      %v1130 = vld [vmem:[%s1062 + $0x32] sm:$0xff]
      %v1131 = vld [vmem:[%s1062 + $0x42] sm:$0xff]
      %v1132 = vld [vmem:[%s1062 + $0x52] sm:$0xff]
      %v1133 = vld [vmem:[%s1062 + $0x62] sm:$0xff]
      %v1134 = vld [vmem:[%s1062 + $0x72] sm:$0xff]
      %s1135 = scalar_lea.vmem %s4, 17
      %v1136 = vld [vmem:[%s1135] sm:$0x1]
      %v1138 = vlaneseq
      %v1139 = vshrl.u32 %v1138, 7
      %v1140 = vsub.s32 0, %v1139
      %v1141 = vrot.slane %v1136, %v1140
      %v1143 = vmul.f32 %v1127, %v1141
      %v1144 = vmul.f32 %v1128, %v1141
      %v1145 = vmul.f32 %v1129, %v1141
      %v1146 = vmul.f32 %v1130, %v1141
      %v1147 = vmul.f32 %v1131, %v1141
      %v1148 = vmul.f32 %v1132, %v1141
      %v1149 = vmul.f32 %v1133, %v1141
      %v1150 = vmul.f32 %v1134, %v1141
      %v1151 = vadd.f32 %v1119, %v1143
      %v1152 = vadd.f32 %v1120, %v1144
      %v1153 = vadd.f32 %v1121, %v1145
      %v1154 = vadd.f32 %v1122, %v1146
      %v1155 = vadd.f32 %v1123, %v1147
      %v1156 = vadd.f32 %v1124, %v1148
      %v1157 = vadd.f32 %v1125, %v1149
      %v1158 = vadd.f32 %v1126, %v1150
      %v1159 = vld [vmem:[%s1062 + $0x3] sm:$0xff]
      %v1160 = vld [vmem:[%s1062 + $0x13] sm:$0xff]
      %v1161 = vld [vmem:[%s1062 + $0x23] sm:$0xff]
      %v1162 = vld [vmem:[%s1062 + $0x33] sm:$0xff]
      %v1163 = vld [vmem:[%s1062 + $0x43] sm:$0xff]
      %v1164 = vld [vmem:[%s1062 + $0x53] sm:$0xff]
      %v1165 = vld [vmem:[%s1062 + $0x63] sm:$0xff]
      %v1166 = vld [vmem:[%s1062 + $0x73] sm:$0xff]
      %s1167 = scalar_lea.vmem %s4, 18
      %v1168 = vld [vmem:[%s1167] sm:$0x1]
      %v1170 = vlaneseq
      %v1171 = vshrl.u32 %v1170, 7
      %v1172 = vsub.s32 0, %v1171
      %v1173 = vrot.slane %v1168, %v1172
      %v1175 = vmul.f32 %v1159, %v1173
      %v1176 = vmul.f32 %v1160, %v1173
      %v1177 = vmul.f32 %v1161, %v1173
      %v1178 = vmul.f32 %v1162, %v1173
      %v1179 = vmul.f32 %v1163, %v1173
      %v1180 = vmul.f32 %v1164, %v1173
      %v1181 = vmul.f32 %v1165, %v1173
      %v1182 = vmul.f32 %v1166, %v1173
      %v1183 = vadd.f32 %v1151, %v1175
      %v1184 = vadd.f32 %v1152, %v1176
      %v1185 = vadd.f32 %v1153, %v1177
      %v1186 = vadd.f32 %v1154, %v1178
      %v1187 = vadd.f32 %v1155, %v1179
      %v1188 = vadd.f32 %v1156, %v1180
      %v1189 = vadd.f32 %v1157, %v1181
      %v1190 = vadd.f32 %v1158, %v1182
      %v1191 = vld [vmem:[%s1062 + $0x4] sm:$0xff]
      %v1192 = vld [vmem:[%s1062 + $0x14] sm:$0xff]
      %v1193 = vld [vmem:[%s1062 + $0x24] sm:$0xff]
      %v1194 = vld [vmem:[%s1062 + $0x34] sm:$0xff]
      %v1195 = vld [vmem:[%s1062 + $0x44] sm:$0xff]
      %v1196 = vld [vmem:[%s1062 + $0x54] sm:$0xff]
      %v1197 = vld [vmem:[%s1062 + $0x64] sm:$0xff]
      %v1198 = vld [vmem:[%s1062 + $0x74] sm:$0xff]
      %s1199 = scalar_lea.vmem %s4, 19
      %v1200 = vld [vmem:[%s1199] sm:$0x1]
      %v1202 = vlaneseq
      %v1203 = vshrl.u32 %v1202, 7
      %v1204 = vsub.s32 0, %v1203
      %v1205 = vrot.slane %v1200, %v1204
      %v1207 = vmul.f32 %v1191, %v1205
      %v1208 = vmul.f32 %v1192, %v1205
      %v1209 = vmul.f32 %v1193, %v1205
      %v1210 = vmul.f32 %v1194, %v1205
      %v1211 = vmul.f32 %v1195, %v1205
      %v1212 = vmul.f32 %v1196, %v1205
      %v1213 = vmul.f32 %v1197, %v1205
      %v1214 = vmul.f32 %v1198, %v1205
      %v1215 = vadd.f32 %v1183, %v1207
      %v1216 = vadd.f32 %v1184, %v1208
      %v1217 = vadd.f32 %v1185, %v1209
      %v1218 = vadd.f32 %v1186, %v1210
      %v1219 = vadd.f32 %v1187, %v1211
      %v1220 = vadd.f32 %v1188, %v1212
      %v1221 = vadd.f32 %v1189, %v1213
      %v1222 = vadd.f32 %v1190, %v1214
      %s1223 = scalar_lea.vmem [#allocation2], 64
      %v1224 = vld [vmem:[%s1223] sm:$0xff]
      %v1225 = vld [vmem:[%s1223 + $0x10] sm:$0xff]
      %v1226 = vld [vmem:[%s1223 + $0x20] sm:$0xff]
      %v1227 = vld [vmem:[%s1223 + $0x30] sm:$0xff]
      %v1228 = vld [vmem:[%s1223 + $0x40] sm:$0xff]
      %v1229 = vld [vmem:[%s1223 + $0x50] sm:$0xff]
      %v1230 = vld [vmem:[%s1223 + $0x60] sm:$0xff]
      %v1231 = vld [vmem:[%s1223 + $0x70] sm:$0xff]
      %s1232 = scalar_lea.vmem %s4, 20
      %v1233 = vld [vmem:[%s1232] sm:$0x1]
      %v1235 = vlaneseq
      %v1236 = vshrl.u32 %v1235, 7
      %v1237 = vsub.s32 0, %v1236
      %v1238 = vrot.slane %v1233, %v1237
      %v1240 = vmul.f32 %v1224, %v1238
      %v1241 = vmul.f32 %v1225, %v1238
      %v1242 = vmul.f32 %v1226, %v1238
      %v1243 = vmul.f32 %v1227, %v1238
      %v1244 = vmul.f32 %v1228, %v1238
      %v1245 = vmul.f32 %v1229, %v1238
      %v1246 = vmul.f32 %v1230, %v1238
      %v1247 = vmul.f32 %v1231, %v1238
      %v1248 = vadd.f32 %v1215, %v1240
      %v1249 = vadd.f32 %v1216, %v1241
      %v1250 = vadd.f32 %v1217, %v1242
      %v1251 = vadd.f32 %v1218, %v1243
      %v1252 = vadd.f32 %v1219, %v1244
      %v1253 = vadd.f32 %v1220, %v1245
      %v1254 = vadd.f32 %v1221, %v1246
      %v1255 = vadd.f32 %v1222, %v1247
      %v1256 = vld [vmem:[%s1223 + $0x1] sm:$0xff]
      %v1257 = vld [vmem:[%s1223 + $0x11] sm:$0xff]
      %v1258 = vld [vmem:[%s1223 + $0x21] sm:$0xff]
      %v1259 = vld [vmem:[%s1223 + $0x31] sm:$0xff]
      %v1260 = vld [vmem:[%s1223 + $0x41] sm:$0xff]
      %v1261 = vld [vmem:[%s1223 + $0x51] sm:$0xff]
      %v1262 = vld [vmem:[%s1223 + $0x61] sm:$0xff]
      %v1263 = vld [vmem:[%s1223 + $0x71] sm:$0xff]
      %s1264 = scalar_lea.vmem %s4, 21
      %v1265 = vld [vmem:[%s1264] sm:$0x1]
      %v1267 = vlaneseq
      %v1268 = vshrl.u32 %v1267, 7
      %v1269 = vsub.s32 0, %v1268
      %v1270 = vrot.slane %v1265, %v1269
      %v1272 = vmul.f32 %v1256, %v1270
      %v1273 = vmul.f32 %v1257, %v1270
      %v1274 = vmul.f32 %v1258, %v1270
      %v1275 = vmul.f32 %v1259, %v1270
      %v1276 = vmul.f32 %v1260, %v1270
      %v1277 = vmul.f32 %v1261, %v1270
      %v1278 = vmul.f32 %v1262, %v1270
      %v1279 = vmul.f32 %v1263, %v1270
      %v1280 = vadd.f32 %v1248, %v1272
      %v1281 = vadd.f32 %v1249, %v1273
      %v1282 = vadd.f32 %v1250, %v1274
      %v1283 = vadd.f32 %v1251, %v1275
      %v1284 = vadd.f32 %v1252, %v1276
      %v1285 = vadd.f32 %v1253, %v1277
      %v1286 = vadd.f32 %v1254, %v1278
      %v1287 = vadd.f32 %v1255, %v1279
      %v1288 = vld [vmem:[%s1223 + $0x2] sm:$0xff]
      %v1289 = vld [vmem:[%s1223 + $0x12] sm:$0xff]
      %v1290 = vld [vmem:[%s1223 + $0x22] sm:$0xff]
      %v1291 = vld [vmem:[%s1223 + $0x32] sm:$0xff]
      %v1292 = vld [vmem:[%s1223 + $0x42] sm:$0xff]
      %v1293 = vld [vmem:[%s1223 + $0x52] sm:$0xff]
      %v1294 = vld [vmem:[%s1223 + $0x62] sm:$0xff]
      %v1295 = vld [vmem:[%s1223 + $0x72] sm:$0xff]
      %s1296 = scalar_lea.vmem %s4, 22
      %v1297 = vld [vmem:[%s1296] sm:$0x1]
      %v1299 = vlaneseq
      %v1300 = vshrl.u32 %v1299, 7
      %v1301 = vsub.s32 0, %v1300
      %v1302 = vrot.slane %v1297, %v1301
      %v1304 = vmul.f32 %v1288, %v1302
      %v1305 = vmul.f32 %v1289, %v1302
      %v1306 = vmul.f32 %v1290, %v1302
      %v1307 = vmul.f32 %v1291, %v1302
      %v1308 = vmul.f32 %v1292, %v1302
      %v1309 = vmul.f32 %v1293, %v1302
      %v1310 = vmul.f32 %v1294, %v1302
      %v1311 = vmul.f32 %v1295, %v1302
      %v1312 = vadd.f32 %v1280, %v1304
      %v1313 = vadd.f32 %v1281, %v1305
      %v1314 = vadd.f32 %v1282, %v1306
      %v1315 = vadd.f32 %v1283, %v1307
      %v1316 = vadd.f32 %v1284, %v1308
      %v1317 = vadd.f32 %v1285, %v1309
      %v1318 = vadd.f32 %v1286, %v1310
      %v1319 = vadd.f32 %v1287, %v1311
      %v1320 = vld [vmem:[%s1223 + $0x3] sm:$0xff]
      %v1321 = vld [vmem:[%s1223 + $0x13] sm:$0xff]
      %v1322 = vld [vmem:[%s1223 + $0x23] sm:$0xff]
      %v1323 = vld [vmem:[%s1223 + $0x33] sm:$0xff]
      %v1324 = vld [vmem:[%s1223 + $0x43] sm:$0xff]
      %v1325 = vld [vmem:[%s1223 + $0x53] sm:$0xff]
      %v1326 = vld [vmem:[%s1223 + $0x63] sm:$0xff]
      %v1327 = vld [vmem:[%s1223 + $0x73] sm:$0xff]
      %s1328 = scalar_lea.vmem %s4, 23
      %v1329 = vld [vmem:[%s1328] sm:$0x1]
      %v1331 = vlaneseq
      %v1332 = vshrl.u32 %v1331, 7
      %v1333 = vsub.s32 0, %v1332
      %v1334 = vrot.slane %v1329, %v1333
      %v1336 = vmul.f32 %v1320, %v1334
      %v1337 = vmul.f32 %v1321, %v1334
      %v1338 = vmul.f32 %v1322, %v1334
      %v1339 = vmul.f32 %v1323, %v1334
      %v1340 = vmul.f32 %v1324, %v1334
      %v1341 = vmul.f32 %v1325, %v1334
      %v1342 = vmul.f32 %v1326, %v1334
      %v1343 = vmul.f32 %v1327, %v1334
      %v1344 = vadd.f32 %v1312, %v1336
      %v1345 = vadd.f32 %v1313, %v1337
      %v1346 = vadd.f32 %v1314, %v1338
      %v1347 = vadd.f32 %v1315, %v1339
      %v1348 = vadd.f32 %v1316, %v1340
      %v1349 = vadd.f32 %v1317, %v1341
      %v1350 = vadd.f32 %v1318, %v1342
      %v1351 = vadd.f32 %v1319, %v1343
      %v1352 = vld [vmem:[%s1223 + $0x4] sm:$0xff]
      %v1353 = vld [vmem:[%s1223 + $0x14] sm:$0xff]
      %v1354 = vld [vmem:[%s1223 + $0x24] sm:$0xff]
      %v1355 = vld [vmem:[%s1223 + $0x34] sm:$0xff]
      %v1356 = vld [vmem:[%s1223 + $0x44] sm:$0xff]
      %v1357 = vld [vmem:[%s1223 + $0x54] sm:$0xff]
      %v1358 = vld [vmem:[%s1223 + $0x64] sm:$0xff]
      %v1359 = vld [vmem:[%s1223 + $0x74] sm:$0xff]
      %s1360 = scalar_lea.vmem %s4, 24
      %v1361 = vld [vmem:[%s1360] sm:$0x1]
      %v1363 = vlaneseq
      %v1364 = vshrl.u32 %v1363, 7
      %v1365 = vsub.s32 0, %v1364
      %v1366 = vrot.slane %v1361, %v1365
      %v1368 = vmul.f32 %v1352, %v1366
      %v1369 = vmul.f32 %v1353, %v1366
      %v1370 = vmul.f32 %v1354, %v1366
      %v1371 = vmul.f32 %v1355, %v1366
      %v1372 = vmul.f32 %v1356, %v1366
      %v1373 = vmul.f32 %v1357, %v1366
      %v1374 = vmul.f32 %v1358, %v1366
      %v1375 = vmul.f32 %v1359, %v1366
      %v1376 = vadd.f32 %v1344, %v1368
      %v1377 = vadd.f32 %v1345, %v1369
      %v1378 = vadd.f32 %v1346, %v1370
      %v1379 = vadd.f32 %v1347, %v1371
      %v1380 = vadd.f32 %v1348, %v1372
      %v1381 = vadd.f32 %v1349, %v1373
      %v1382 = vadd.f32 %v1350, %v1374
      %v1383 = vadd.f32 %v1351, %v1375
      %s1384 = scalar_lea.vmem %s3, 2
      %v1385 = vld [vmem:[%s1384] sm:$0x1]
      %v1387 = vlaneseq
      %v1388 = vshrl.u32 %v1387, 7
      %v1389 = vsub.s32 0, %v1388
      %v1390 = vrot.slane %v1385, %v1389
      %v1392 = vadd.f32 %v1376, %v1390
      %v1393 = vadd.f32 %v1377, %v1390
      %v1394 = vadd.f32 %v1378, %v1390
      %v1395 = vadd.f32 %v1379, %v1390
      %v1396 = vadd.f32 %v1380, %v1390
      %v1397 = vadd.f32 %v1381, %v1390
      %v1398 = vadd.f32 %v1382, %v1390
      %v1399 = vadd.f32 %v1383, %v1390
      %v1400 = vxor.u32 %v1392, 2147483648
      %v1401 = vxor.u32 %v1393, 2147483648
      %v1402 = vxor.u32 %v1394, 2147483648
      %v1403 = vxor.u32 %v1395, 2147483648
      %v1404 = vxor.u32 %v1396, 2147483648
      %v1405 = vxor.u32 %v1397, 2147483648
      %v1406 = vxor.u32 %v1398, 2147483648
      %v1407 = vxor.u32 %v1399, 2147483648
      %v1408 = vmul.f32 %v1400, 1.442695
      %v1409 = vpow.pop %v1408
      %v1410 = vmul.f32 %v1401, 1.442695
      %v1411 = vpow.pop %v1410
      %v1412 = vmul.f32 %v1402, 1.442695
      %v1413 = vpow.pop %v1412
      %v1414 = vmul.f32 %v1403, 1.442695
      %v1415 = vpow.pop %v1414
      %v1416 = vmul.f32 %v1404, 1.442695
      %v1417 = vpow.pop %v1416
      %v1418 = vmul.f32 %v1405, 1.442695
      %v1419 = vpow.pop %v1418
      %v1420 = vmul.f32 %v1406, 1.442695
      %v1421 = vpow.pop %v1420
      %v1422 = vmul.f32 %v1407, 1.442695
      %v1423 = vpow.pop %v1422
      %v1424 = vadd.f32 %v1409, 1.0
      %v1425 = vadd.f32 %v1411, 1.0
      %v1426 = vadd.f32 %v1413, 1.0
      %v1427 = vadd.f32 %v1415, 1.0
      %v1428 = vadd.f32 %v1417, 1.0
      %v1429 = vadd.f32 %v1419, 1.0
      %v1430 = vadd.f32 %v1421, 1.0
      %v1431 = vadd.f32 %v1423, 1.0
      %v1432 = vrcp.pop %v1424
      %v1433 = vmul.f32 1.0, %v1432
      %v1434 = vrcp.pop %v1425
      %v1435 = vmul.f32 1.0, %v1434
      %v1436 = vrcp.pop %v1426
      %v1437 = vmul.f32 1.0, %v1436
      %v1438 = vrcp.pop %v1427
      %v1439 = vmul.f32 1.0, %v1438
      %v1440 = vrcp.pop %v1428
      %v1441 = vmul.f32 1.0, %v1440
      %v1442 = vrcp.pop %v1429
      %v1443 = vmul.f32 1.0, %v1442
      %v1444 = vrcp.pop %v1430
      %v1445 = vmul.f32 1.0, %v1444
      %v1446 = vrcp.pop %v1431
      %v1447 = vmul.f32 1.0, %v1446
      %v1448 = vmul.f32 %v1392, %v1433
      %v1449 = vmul.f32 %v1393, %v1435
      %v1450 = vmul.f32 %v1394, %v1437
      %v1451 = vmul.f32 %v1395, %v1439
      %v1452 = vmul.f32 %v1396, %v1441
      %v1453 = vmul.f32 %v1397, %v1443
      %v1454 = vmul.f32 %v1398, %v1445
      %v1455 = vmul.f32 %v1399, %v1447
      %v1456 = vpack.c.bf16 %v1449, %v1448
      %v1457 = vpack.c.bf16 %v1451, %v1450
      %v1458 = vpack.c.bf16 %v1453, %v1452
      %v1459 = vpack.c.bf16 %v1455, %v1454
      %1460 = vst [vmem:[#allocation3] sm:$0xff] %v1456
      %1461 = vst [vmem:[#allocation3 + $0x8] sm:$0xff] %v1457
      %1462 = vst [vmem:[#allocation3 + $0x10] sm:$0xff] %v1458
      %1463 = vst [vmem:[#allocation3 + $0x18] sm:$0xff] %v1459
      %v1464 = vld [vmem:[#allocation3] sm:$0xff]
      %v1465 = vld [vmem:[#allocation3 + $0x8] sm:$0xff]
      %v1466 = vld [vmem:[#allocation3 + $0x10] sm:$0xff]
      %v1467 = vld [vmem:[#allocation3 + $0x18] sm:$0xff]
      %s1468 = scalar_lea.vmem %s2, 64
      %v1469 = vld [vmem:[%s1468] sm:$0xf]
      %v1470 = vld [vmem:[%s1468 + $0x4] sm:$0xf]
      %v1471 = vld [vmem:[%s1468 + $0x8] sm:$0xf]
      %v1472 = vld [vmem:[%s1468 + $0xc] sm:$0xf]
      %v1473 = vld [vmem:[%s1468 + $0x10] sm:$0xf]
      %v1474 = vld [vmem:[%s1468 + $0x14] sm:$0xf]
      %v1475 = vld [vmem:[%s1468 + $0x18] sm:$0xf]
      %v1476 = vld [vmem:[%s1468 + $0x1c] sm:$0xf]
      %v1477 = vld [vmem:[%s1468 + $0x20] sm:$0xf]
      %v1478 = vld [vmem:[%s1468 + $0x24] sm:$0xf]
      %v1479 = vld [vmem:[%s1468 + $0x28] sm:$0xf]
      %v1480 = vld [vmem:[%s1468 + $0x2c] sm:$0xf]
      %v1481 = vld [vmem:[%s1468 + $0x30] sm:$0xf]
      %v1482 = vld [vmem:[%s1468 + $0x34] sm:$0xf]
      %v1483 = vld [vmem:[%s1468 + $0x38] sm:$0xf]
      %v1484 = vld [vmem:[%s1468 + $0x3c] sm:$0xf]
      %s1485 = scalar_lea.vmem %s3, 3
      %v1486 = vld [vmem:[%s1485] sm:$0x1]
      %v1488 = vlaneseq
      %v1489 = vshrl.u32 %v1488, 7
      %v1490 = vsub.s32 0, %v1489
      %v1491 = vrot.slane %v1486, %v1490
      %v1509 = vunpack.c.l.b16 %v1469
      %v1510 = vunpack.c.l.b16 %v1470
      %v1511 = vunpack.c.l.b16 %v1471
      %v1512 = vunpack.c.l.b16 %v1472
      %v1513 = vunpack.c.l.b16 %v1473
      %v1514 = vunpack.c.l.b16 %v1474
      %v1515 = vunpack.c.l.b16 %v1475
      %v1516 = vunpack.c.l.b16 %v1476
      %v1517 = vunpack.c.l.b16 %v1477
      %v1518 = vunpack.c.l.b16 %v1478
      %v1519 = vunpack.c.l.b16 %v1479
      %v1520 = vunpack.c.l.b16 %v1480
      %v1521 = vunpack.c.l.b16 %v1481
      %v1522 = vunpack.c.l.b16 %v1482
      %v1523 = vunpack.c.l.b16 %v1483
      %v1524 = vunpack.c.l.b16 %v1484
      %v1525 = vpack.c.b16 %v1510, %v1509
      %v1526 = vpack.c.b16 %v1512, %v1511
      %v1527 = vpack.c.b16 %v1514, %v1513
      %v1528 = vpack.c.b16 %v1516, %v1515
      %v1529 = vpack.c.b16 %v1518, %v1517
      %v1530 = vpack.c.b16 %v1520, %v1519
      %v1531 = vpack.c.b16 %v1522, %v1521
      %v1532 = vpack.c.b16 %v1524, %v1523
      %1541 = vmatprep.subr.bf16.mxu0 0
      %1542 = vmatpush1.bf16.msra.mxu0 %v1525
      %1543 = vmatprep.subr.bf16.mxu0 0
      %1544 = vmatpush1.bf16.msra.mxu0 %v1526
      %1545 = vmatprep.subr.bf16.mxu0 0
      %1546 = vmatpush1.bf16.msra.mxu0 %v1527
      %1547 = vmatprep.subr.bf16.mxu0 0
      %1548 = vmatpush1.bf16.msra.mxu0 %v1528
      %1549 = vmatprep.subr.bf16.mxu0 0
      %1550 = vmatpush1.bf16.msra.mxu0 %v1529
      %1551 = vmatprep.subr.bf16.mxu0 0
      %1552 = vmatpush1.bf16.msra.mxu0 %v1530
      %1553 = vmatprep.subr.bf16.mxu0 0
      %1554 = vmatpush1.bf16.msra.mxu0 %v1531
      %1555 = vmatprep.subr.bf16.mxu0 0
      %1556 = vmatpush1.bf16.msra.mxu0 %v1532
      %1557 = vmatprep.subr.bf16.mxu0 0
      %1558 = vmatpush1.bf16.msra.mxu0 0
      %1559 = vmatprep.subr.bf16.mxu0 0
      %1560 = vmatpush1.bf16.msra.mxu0 0
      %1561 = vmatprep.subr.bf16.mxu0 0
      %1562 = vmatpush1.bf16.msra.mxu0 0
      %1563 = vmatprep.subr.bf16.mxu0 0
      %1564 = vmatpush1.bf16.msra.mxu0 0
      %1565 = vmatprep.subr.bf16.mxu0 0
      %1566 = vmatpush1.bf16.msra.mxu0 0
      %1567 = vmatprep.subr.bf16.mxu0 0
      %1568 = vmatpush1.bf16.msra.mxu0 0
      %1569 = vmatprep.subr.bf16.mxu0 0
      %1570 = vmatpush1.bf16.msra.mxu0 0
      %1571 = vmatprep.subr.bf16.mxu0 0
      %1572 = vmatpush1.bf16.msra.mxu0 0
      %1573 = vmatprep.mubr.bf16.mxu0 0
      %1574 = vmatmul.mubr.bf16.gmra.mrb[0].mxu0 %v1464
      %v1575 = vpop.f32.mrb[0].mxu0
      %v1576 = vadd.f32 %v1491, %v1575
      %v1577 = vpop.f32.mrb[0].mxu0
      %v1578 = vpop.f32.mrb[0].mxu0
      %v1579 = vadd.f32 %v1491, %v1578
      %v1580 = vpop.f32.mrb[0].mxu0
      %1581 = vmatprep.mubr.bf16.mxu0 0
      %1582 = vmatmul.mubr.bf16.gmra.mrb[0].mxu0 %v1465
      %v1583 = vpop.f32.mrb[0].mxu0
      %v1584 = vadd.f32 %v1491, %v1583
      %v1585 = vpop.f32.mrb[0].mxu0
      %v1586 = vpop.f32.mrb[0].mxu0
      %v1587 = vadd.f32 %v1491, %v1586
      %v1588 = vpop.f32.mrb[0].mxu0
      %1589 = vmatprep.mubr.bf16.mxu0 0
      %1590 = vmatmul.mubr.bf16.gmra.mrb[0].mxu0 %v1466
      %v1591 = vpop.f32.mrb[0].mxu0
      %v1592 = vadd.f32 %v1491, %v1591
      %v1593 = vpop.f32.mrb[0].mxu0
      %v1594 = vpop.f32.mrb[0].mxu0
      %v1595 = vadd.f32 %v1491, %v1594
      %v1596 = vpop.f32.mrb[0].mxu0
      %1597 = vmatprep.mubr.bf16.mxu0 0
      %1598 = vmatmul.mubr.bf16.gmra.mrb[0].mxu0 %v1467
      %v1599 = vpop.f32.mrb[0].mxu0
      %v1600 = vadd.f32 %v1491, %v1599
      %v1601 = vpop.f32.mrb[0].mxu0
      %v1602 = vpop.f32.mrb[0].mxu0
      %v1603 = vadd.f32 %v1491, %v1602
      %v1604 = vpop.f32.mrb[0].mxu0
      %1605 = vdwg.mxu0
      %v1606 = vunpack.c.l.bf16 %v385
      %v1607 = vunpack.c.h.bf16 %v385
      %v1608 = vunpack.c.l.bf16 %v386
      %v1609 = vunpack.c.h.bf16 %v386
      %v1610 = vunpack.c.l.bf16 %v387
      %v1611 = vunpack.c.h.bf16 %v387
      %v1612 = vunpack.c.l.bf16 %v388
      %v1613 = vunpack.c.h.bf16 %v388
      %v1614 = vadd.f32 %v1576, %v1606
      %v1615 = vadd.f32 %v1579, %v1607
      %v1616 = vadd.f32 %v1584, %v1608
      %v1617 = vadd.f32 %v1587, %v1609
      %v1618 = vadd.f32 %v1592, %v1610
      %v1619 = vadd.f32 %v1595, %v1611
      %v1620 = vadd.f32 %v1600, %v1612
      %v1621 = vadd.f32 %v1603, %v1613
      %v1622 = vpack.c.bf16 %v1615, %v1614
      %v1623 = vpack.c.bf16 %v1617, %v1616
      %v1624 = vpack.c.bf16 %v1619, %v1618
      %v1625 = vpack.c.bf16 %v1621, %v1620
      %s1626 = scalar_lea.vmem %s2, 128
      %v1627 = vld [vmem:[%s1626] sm:$0xf]
      %v1628 = vld [vmem:[%s1626 + $0x4] sm:$0xf]
      %v1629 = vld [vmem:[%s1626 + $0x8] sm:$0xf]
      %v1630 = vld [vmem:[%s1626 + $0xc] sm:$0xf]
      %v1631 = vld [vmem:[%s1626 + $0x10] sm:$0xf]
      %v1632 = vld [vmem:[%s1626 + $0x14] sm:$0xf]
      %v1633 = vld [vmem:[%s1626 + $0x18] sm:$0xf]
      %v1634 = vld [vmem:[%s1626 + $0x1c] sm:$0xf]
      %v1635 = vld [vmem:[%s1626 + $0x20] sm:$0xf]
      %v1636 = vld [vmem:[%s1626 + $0x24] sm:$0xf]
      %v1637 = vld [vmem:[%s1626 + $0x28] sm:$0xf]
      %v1638 = vld [vmem:[%s1626 + $0x2c] sm:$0xf]
      %v1639 = vld [vmem:[%s1626 + $0x30] sm:$0xf]
      %v1640 = vld [vmem:[%s1626 + $0x34] sm:$0xf]
      %v1641 = vld [vmem:[%s1626 + $0x38] sm:$0xf]
      %v1642 = vld [vmem:[%s1626 + $0x3c] sm:$0xf]
      %s1643 = scalar_lea.vmem %s3, 4
      %v1644 = vld [vmem:[%s1643] sm:$0x1]
      %v1646 = vlaneseq
      %v1647 = vshrl.u32 %v1646, 7
      %v1648 = vsub.s32 0, %v1647
      %v1649 = vrot.slane %v1644, %v1648
      %v1667 = vunpack.c.l.b16 %v1627
      %v1668 = vunpack.c.l.b16 %v1628
      %v1669 = vunpack.c.l.b16 %v1629
      %v1670 = vunpack.c.l.b16 %v1630
      %v1671 = vunpack.c.l.b16 %v1631
      %v1672 = vunpack.c.l.b16 %v1632
      %v1673 = vunpack.c.l.b16 %v1633
      %v1674 = vunpack.c.l.b16 %v1634
      %v1675 = vunpack.c.l.b16 %v1635
      %v1676 = vunpack.c.l.b16 %v1636
      %v1677 = vunpack.c.l.b16 %v1637
      %v1678 = vunpack.c.l.b16 %v1638
      %v1679 = vunpack.c.l.b16 %v1639
      %v1680 = vunpack.c.l.b16 %v1640
      %v1681 = vunpack.c.l.b16 %v1641
      %v1682 = vunpack.c.l.b16 %v1642
      %v1683 = vpack.c.b16 %v1668, %v1667
      %v1684 = vpack.c.b16 %v1670, %v1669
      %v1685 = vpack.c.b16 %v1672, %v1671
      %v1686 = vpack.c.b16 %v1674, %v1673
      %v1687 = vpack.c.b16 %v1676, %v1675
      %v1688 = vpack.c.b16 %v1678, %v1677
      %v1689 = vpack.c.b16 %v1680, %v1679
      %v1690 = vpack.c.b16 %v1682, %v1681
      %1699 = vmatprep.subr.bf16.mxu0 0
      %1700 = vmatpush1.bf16.msra.mxu0 %v1683
      %1701 = vmatprep.subr.bf16.mxu0 0
      %1702 = vmatpush1.bf16.msra.mxu0 %v1684
      %1703 = vmatprep.subr.bf16.mxu0 0
      %1704 = vmatpush1.bf16.msra.mxu0 %v1685
      %1705 = vmatprep.subr.bf16.mxu0 0
      %1706 = vmatpush1.bf16.msra.mxu0 %v1686
      %1707 = vmatprep.subr.bf16.mxu0 0
      %1708 = vmatpush1.bf16.msra.mxu0 %v1687
      %1709 = vmatprep.subr.bf16.mxu0 0
      %1710 = vmatpush1.bf16.msra.mxu0 %v1688
      %1711 = vmatprep.subr.bf16.mxu0 0
      %1712 = vmatpush1.bf16.msra.mxu0 %v1689
      %1713 = vmatprep.subr.bf16.mxu0 0
      %1714 = vmatpush1.bf16.msra.mxu0 %v1690
      %1715 = vmatprep.subr.bf16.mxu0 0
      %1716 = vmatpush1.bf16.msra.mxu0 0
      %1717 = vmatprep.subr.bf16.mxu0 0
      %1718 = vmatpush1.bf16.msra.mxu0 0
      %1719 = vmatprep.subr.bf16.mxu0 0
      %1720 = vmatpush1.bf16.msra.mxu0 0
      %1721 = vmatprep.subr.bf16.mxu0 0
      %1722 = vmatpush1.bf16.msra.mxu0 0
      %1723 = vmatprep.subr.bf16.mxu0 0
      %1724 = vmatpush1.bf16.msra.mxu0 0
      %1725 = vmatprep.subr.bf16.mxu0 0
      %1726 = vmatpush1.bf16.msra.mxu0 0
      %1727 = vmatprep.subr.bf16.mxu0 0
      %1728 = vmatpush1.bf16.msra.mxu0 0
      %1729 = vmatprep.subr.bf16.mxu0 0
      %1730 = vmatpush1.bf16.msra.mxu0 0
      %1731 = vmatprep.mubr.bf16.mxu0 0
      %1732 = vmatmul.mubr.bf16.gmra.mrb[0].mxu0 %v1622
      %v1733 = vpop.f32.mrb[0].mxu0
      %v1734 = vadd.f32 %v1649, %v1733
      %v1735 = vpop.f32.mrb[0].mxu0
      %v1736 = vpop.f32.mrb[0].mxu0
      %v1737 = vadd.f32 %v1649, %v1736
      %v1738 = vpop.f32.mrb[0].mxu0
      %1739 = vmatprep.mubr.bf16.mxu0 0
      %1740 = vmatmul.mubr.bf16.gmra.mrb[0].mxu0 %v1623
      %v1741 = vpop.f32.mrb[0].mxu0
      %v1742 = vadd.f32 %v1649, %v1741
      %v1743 = vpop.f32.mrb[0].mxu0
      %v1744 = vpop.f32.mrb[0].mxu0
      %v1745 = vadd.f32 %v1649, %v1744
      %v1746 = vpop.f32.mrb[0].mxu0
      %1747 = vmatprep.mubr.bf16.mxu0 0
      %1748 = vmatmul.mubr.bf16.gmra.mrb[0].mxu0 %v1624
      %v1749 = vpop.f32.mrb[0].mxu0
      %v1750 = vadd.f32 %v1649, %v1749
      %v1751 = vpop.f32.mrb[0].mxu0
      %v1752 = vpop.f32.mrb[0].mxu0
      %v1753 = vadd.f32 %v1649, %v1752
      %v1754 = vpop.f32.mrb[0].mxu0
      %1755 = vmatprep.mubr.bf16.mxu0 0
      %1756 = vmatmul.mubr.bf16.gmra.mrb[0].mxu0 %v1625
      %v1757 = vpop.f32.mrb[0].mxu0
      %v1758 = vadd.f32 %v1649, %v1757
      %v1759 = vpop.f32.mrb[0].mxu0
      %v1760 = vpop.f32.mrb[0].mxu0
      %v1761 = vadd.f32 %v1649, %v1760
      %v1762 = vpop.f32.mrb[0].mxu0
      %1763 = vdwg.mxu0
      %v1764 = vmax.f32 %v1734, 0.0
      %v1765 = vmax.f32 %v1737, 0.0
      %v1766 = vmax.f32 %v1742, 0.0
      %v1767 = vmax.f32 %v1745, 0.0
      %v1768 = vmax.f32 %v1750, 0.0
      %v1769 = vmax.f32 %v1753, 0.0
      %v1770 = vmax.f32 %v1758, 0.0
      %v1771 = vmax.f32 %v1761, 0.0
      %v1772 = vadd.f32 %v1764, %v1765
      %v1773 = vadd.f32 %v1772, %v1766
      %v1774 = vadd.f32 %v1773, %v1767
      %v1775 = vadd.f32 %v1774, %v1768
      %v1776 = vadd.f32 %v1775, %v1769
      %v1777 = vadd.f32 %v1776, %v1770
      %v1778 = vadd.f32 %v1777, %v1771
      %v1779 = vrot.slane %v1778, 4
      %v1780 = vadd.f32 %v1778, %v1779
      %v1781 = vrot.slane %v1780, 2
      %v1782 = vadd.f32 %v1780, %v1781
      %v1783 = vrot.slane %v1782, 1
      %v1784 = vadd.f32 %v1782, %v1783
      %v1785 = vrcp.pop 64.0
      %v1786 = vmul.f32 %v1784, %v1785
      %1787 = vst [vmem:[%s220] sm:$0x1] %v1786
      %p1788 = scmp.lt.s32.totalorder %s16, 1
      %s1789 = scalar_select %p1788, %s16, 1
      %s1790 = scalar_lea.vmem %s5, %s1789
      // Predicated region
      $region41: #{mixnet_forward.2} parent=39 // pred_check
        %p1791 = pneg %p144
      $region42: #{mixnet_forward.2} parent=39 // pred_check_branch
        %1793 = sbr.rel (%p1791) target = $region44
      $region43: #{mixnet_forward.2} parent=39 // pred_region
        _
      $region44: #{mixnet_forward.2} parent=39 // pred_fallthru
        _
    $region40: #{mixnet_forward.2} parent=5 // pred_fallthru
      _
    %p1794 = scmp.le.s32.totalorder 2, %s11
    // Predicated region
    $region45: #{mixnet_forward.2} parent=5 // pred_check
      %p1795 = pneg %p1794
    $region46: #{mixnet_forward.2} parent=5 // pred_check_branch
      %1797 = sbr.rel (%p1795) target = $region48
    $region47: #{mixnet_forward.2} parent=5 // pred_region
      %s1798 = ssub.s32 %s11, 2
      // Predicated region
      $region49: #{mixnet_forward.2} parent=47 // pred_check
        %p1799 = pneg %p150
      $region50: #{mixnet_forward.2} parent=47 // pred_check_branch
        %1801 = sbr.rel (%p1799) target = $region52
      $region51: #{mixnet_forward.2} parent=47 // pred_region
        %p1802 = scmp.lt.s32.totalorder %s17, 1
        %s1803 = scalar_select %p1802, %s17, 1
        %s1804 = scalar_lea.vmem %s5, %s1803
      $region52: #{mixnet_forward.2} parent=47 // pred_fallthru
        _
    $region48: #{mixnet_forward.2} parent=5 // pred_fallthru
      _
  $region6: #{mixnet_forward.2} parent=0 // loop_footer
    %s15 = sadd.s32 1, %s11
  $region7: #{mixnet_forward.2} parent=0 // loop_footer_branch
    %10 = sbr.rel target = $region3
  $region8: #{mixnet_forward.2} parent=0 // loop_exit
    _

</llo_original>
